<compile_context>
chip_gen: v5e
topology: v5e:2x2
jax: 0.10.0
libtpu: 0.0.40
codegen_flags: <defaults>
</compile_context>

<pallas_src>
import functools

import jax
import jax.numpy as jnp
from jax import lax
from jax.experimental import pallas as pl
from jax.experimental.pallas import tpu as pltpu


# --------------------------------------------------------------------------
# Pallas kernel: full forward for ONE batch tile (bt elements)
# --------------------------------------------------------------------------
def cnn_gru_kernel(x_ref,                                     # (1, bt*L, Cin)
                   c1w_ref, c1b_ref,                          # (3*Cin, C1), (1, C1)
                   c2w_ref, c2b_ref,                          # (3*C1, C2), (1, C2)
                   wih0_ref, whh0_ref, bih0_ref, bhhn0_ref,   # (C2,3H),(H,3H),(1,3H),(1,H)
                   wih1_ref, whh1_ref, bih1_ref, bhhn1_ref,   # (H,3H),(H,3H),(1,3H),(1,H)
                   fcw_ref, fcb_ref,                          # (H, Opad), (1, Opad)
                   out_ref,                                   # (1, bt, Opad)
                   p1_scr, p2_scr, gi_scr, h0all_scr,         # VMEM scratch
                   *, bt, seq_len):
    f32 = jnp.float32
    H = whh0_ref.shape[0]
    T = seq_len // 4

    def conv1d_relu(x, w_ref, b_ref, cur_len):
        # x: (bt*cur_len, Cin_l), batch-major flattened rows (row = b*cur_len + t).
        # Conv1d(k=3, padding=1) fused into ONE matmul: concat the three shifted copies
        # on the lane axis and multiply by the (3*Cin_l, Cout) fused weight.
        n = x.shape[0]
        row = lax.broadcasted_iota(jnp.int32, (n, 1), 0)
        t_idx = row % cur_len                                             # (n,1) mask index
        xm1 = jnp.where(t_idx == 0, 0.0, pltpu.roll(x, 1, 0))             # x[t-1], 0 at t=0
        xp1 = jnp.where(t_idx == cur_len - 1, 0.0, pltpu.roll(x, n - 1, 0))  # x[t+1], 0 at end
        xcat = jnp.concatenate([xm1, x, xp1], axis=-1)                    # (n, 3*Cin_l)
        y = jnp.dot(xcat, w_ref[...], preferred_element_type=f32) + b_ref[...]
        return jnp.maximum(y, 0.0)

    def maxpool2(y, scr):
        # MaxPool1d(2): max over consecutive row pairs (pairs never cross a sequence
        # boundary because every per-sequence length here is even).  Pairwise max is
        # done in vregs (roll + maximum); one strided compaction read keeps even rows.
        n = y.shape[0]
        scr[...] = jnp.maximum(y, pltpu.roll(y, n - 1, 0))   # row r = max(y[r], y[r+1])
        return scr[pl.ds(0, n // 2, stride=2), :]

    def gru_gates(gi, gh, hprev, bhh_n):
        # gi already carries bih (all gates) + bhh (r,z gates); gh = h @ whh (no bias).
        r = jax.nn.sigmoid(gi[:, 0:H] + gh[:, 0:H])
        z = jax.nn.sigmoid(gi[:, H:2 * H] + gh[:, H:2 * H])
        n = jnp.tanh(gi[:, 2 * H:3 * H] + r * (gh[:, 2 * H:3 * H] + bhh_n))
        return (1.0 - z) * n + z * hprev

    # ---------------- CNN feature extractor ----------------
    x = x_ref[0]                                        # (bt*L, Cin)
    y = conv1d_relu(x, c1w_ref, c1b_ref, seq_len)       # (bt*L,   C1)
    y = maxpool2(y, p1_scr)                             # (bt*L/2, C1)
    y = conv1d_relu(y, c2w_ref, c2b_ref, seq_len // 2)  # (bt*L/2, C2)
    feats = maxpool2(y, p2_scr)                         # (bt*T,   C2), batch-major

    # ---------------- GRU layer 0 (hoisted input projection) ----------------
    # TODO(synk): optionally cast matmul operands to bf16 (f32 accumulate) once accuracy allows.
    gi_scr[...] = (jnp.dot(feats, wih0_ref[...], preferred_element_type=f32)
                   + bih0_ref[...])                     # (bt*T, 3H), batch-major rows b*T + t
    bhhn0 = jnp.broadcast_to(bhhn0_ref[...], (bt, H))   # hoisted (JAX does not CSE broadcasts)
    h0 = jnp.zeros((bt, H), f32)

    def step0(t, h):
        if bt == 1:
            gi = gi_scr[pl.ds(t, 1), :]
        else:
            # TODO(synk): relayout gi_scr once to time-major to make this read contiguous.
            gi = gi_scr[pl.ds(t, bt, stride=T), :]      # rows {b*T + t} for all b in tile
        gh = jnp.dot(h, whh0_ref[...], preferred_element_type=f32)
        h = gru_gates(gi, gh, h, bhhn0)
        h0all_scr[pl.ds(t * bt, bt), :] = h             # collect time-major
        return h

    if T <= 8:
        for t in range(T):
            h0 = step0(t, h0)
    else:
        h0 = lax.fori_loop(0, T, step0, h0, unroll=False)
    # TODO(synk): nn.GRU inter-layer dropout(p=0.3) applies only in training mode; eval semantics here.

    # ---------------- GRU layer 1 (hoisted input projection) ----------------
    gi_scr[...] = (jnp.dot(h0all_scr[...], wih1_ref[...], preferred_element_type=f32)
                   + bih1_ref[...])                     # (bt*T, 3H), time-major
    bhhn1 = jnp.broadcast_to(bhhn1_ref[...], (bt, H))
    h1 = jnp.zeros((bt, H), f32)

    def step1(t, h):
        gi = gi_scr[pl.ds(t * bt, bt), :]
        gh = jnp.dot(h, whh1_ref[...], preferred_element_type=f32)
        return gru_gates(gi, gh, h, bhhn1)

    if T <= 8:
        for t in range(T):
            h1 = step1(t, h1)
    else:
        h1 = lax.fori_loop(0, T, step1, h1, unroll=False)

    # ---------------- FC head: one lane-dense store per tile ----------------
    out_ref[0] = (jnp.dot(h1, fcw_ref[...], preferred_element_type=f32)
                  + fcb_ref[...]).astype(out_ref.dtype)


# --------------------------------------------------------------------------
# Wrapper: generation-aware tiling + parameter re-layout glue + pallas_call
# --------------------------------------------------------------------------
def _const_spec(shape):
    zeros = (0,) * len(shape)
    return pl.BlockSpec(shape, lambda b, _z=zeros: _z)


def _vmem_budget_and_min_tiles():
    """Generation-aware working-set budget (bytes) and minimum grid-tile count."""
    try:
        vmem = int(pltpu.get_tpu_info().vmem_capacity_bytes)
    except Exception:
        vmem = None
    if vmem is None:
        # Conservative default that fits every generation (v7x has 64 MiB / TC).
        return 48 << 20, 2
    if vmem <= (96 << 20):
        # v7x-class: 64 MiB per TensorCore, 2 TensorCores -> keep an even tile count.
        return max(16 << 20, vmem - (16 << 20)), 2
    # v5e / v6e: single TensorCore, 128 MiB VMEM -> one tile when the batch fits.
    return min(100 << 20, vmem - (16 << 20)), 1


def _pick_batch_tile(B, L, Cin, C1, C2, H, Opad, budget_bytes, min_tiles):
    T = L // 4
    # Resident bytes per batch element: input 2x-buffer + output 2x-buffer + 4 scratches.
    per_elem = 4 * (2 * L * Cin + 2 * Opad + L * C1 + (L // 2) * C2 + 4 * T * H)
    w_elems = (3 * Cin * C1 + C1 + 3 * C1 * C2 + C2
               + C2 * 3 * H + H * 3 * H + 3 * H + H
               + H * 3 * H + H * 3 * H + 3 * H + H
               + H * Opad + Opad)
    w_bytes = 2 * 4 * w_elems                       # weights stay resident (double-buffered)
    usable = max(per_elem, budget_bytes // 2 - w_bytes)
    bt_cap = max(1, usable // per_elem)
    bt = int(max(1, min(bt_cap, pl.cdiv(B, min_tiles))))
    n_tiles = int(pl.cdiv(B, bt))
    if min_tiles > 1 and B >= min_tiles and n_tiles % min_tiles != 0:
        n_tiles += min_tiles - (n_tiles % min_tiles)   # keep both v7x cores busy
    return bt, n_tiles


def cnn_gru_forward(x, p, output_size, *, batch_tile=None):
    B, L, Cin = x.shape
    assert L % 4 == 0, "seq_len must be divisible by 4 (two MaxPool1d(2) stages)"
    f32 = jnp.float32

    C1 = p["conv1_w"].shape[0]
    C2 = p["conv2_w"].shape[0]
    H = p["whh0"].shape[1]
    O = output_size
    Opad = ((O + 127) // 128) * 128                      # lane-dense output store
    T = L // 4

    budget, min_tiles = _vmem_budget_and_min_tiles()
    if batch_tile is None:
        bt, n_tiles = _pick_batch_tile(B, L, Cin, C1, C2, H, Opad, budget, min_tiles)
    else:
        bt = int(batch_tile)
        n_tiles = int(pl.cdiv(B, bt))
    Bp = n_tiles * bt

    xf = x.astype(f32)
    if Bp != B:
        xf = jnp.concatenate([xf, jnp.zeros((Bp - B, L, Cin), f32)], axis=0)
    x_blk = xf.reshape(n_tiles, bt * L, Cin)             # batch-major rows per tile

    # Conv weights (Cout, Cin, 3) -> fused (3*Cin, Cout) taps; biases -> (1, C)
    c1w = jnp.transpose(p["conv1_w"], (2, 1, 0)).reshape(3 * Cin, C1).astype(f32)
    c2w = jnp.transpose(p["conv2_w"], (2, 1, 0)).reshape(3 * C1, C2).astype(f32)
    c1b = p["conv1_b"].reshape(1, -1).astype(f32)
    c2b = p["conv2_b"].reshape(1, -1).astype(f32)

    # GRU weights (3H, in) -> (in, 3H); fold bhh[:2H] (r,z gates) into bih; keep bhh_n separate.
    wih0t, whh0t = p["wih0"].T.astype(f32), p["whh0"].T.astype(f32)
    wih1t, whh1t = p["wih1"].T.astype(f32), p["whh1"].T.astype(f32)
    bih0, bhh0 = p["bih0"].astype(f32), p["bhh0"].astype(f32)
    bih1, bhh1 = p["bih1"].astype(f32), p["bhh1"].astype(f32)
    bih0f = jnp.concatenate([bih0[:2 * H] + bhh0[:2 * H], bih0[2 * H:]]).reshape(1, -1)
    bih1f = jnp.concatenate([bih1[:2 * H] + bhh1[:2 * H], bih1[2 * H:]]).reshape(1, -1)
    bhhn0 = bhh0[2 * H:].reshape(1, -1)
    bhhn1 = bhh1[2 * H:].reshape(1, -1)

    # FC weight/bias padded on the output axis to a multiple of 128 lanes
    fcw = jnp.zeros((H, Opad), f32).at[:, :O].set(p["fc_w"].T.astype(f32))
    fcb = jnp.zeros((1, Opad), f32).at[:, :O].set(p["fc_b"].reshape(1, -1).astype(f32))

    args = (x_blk, c1w, c1b, c2w, c2b, wih0t, whh0t, bih0f, bhhn0,
            wih1t, whh1t, bih1f, bhhn1, fcw, fcb)

    in_specs = [pl.BlockSpec((1, bt * L, Cin), lambda b: (b, 0, 0))]
    in_specs += [_const_spec(a.shape) for a in args[1:]]

    kernel = functools.partial(cnn_gru_kernel, bt=bt, seq_len=L)

    out = pl.pallas_call(
        kernel,
        out_shape=jax.ShapeDtypeStruct((n_tiles, bt, Opad), f32),
        grid=(n_tiles,),
        in_specs=in_specs,
        out_specs=pl.BlockSpec((1, bt, Opad), lambda b: (b, 0, 0)),
        scratch_shapes=[
            pltpu.VMEM((bt * L, C1), f32),        # conv1 pooled-pair maxima (strided compaction)
            pltpu.VMEM((bt * L // 2, C2), f32),   # conv2 pooled-pair maxima (strided compaction)
            pltpu.VMEM((bt * T, 3 * H), f32),     # hoisted GRU input gates (reused by both layers)
            pltpu.VMEM((bt * T, H), f32),         # layer-0 hidden states, time-major
        ],
        compiler_params=pltpu.CompilerParams(
            dimension_semantics=("parallel",),
            vmem_limit_bytes=int(budget + (8 << 20)),
        ),
    )(*args)
    return out.reshape(Bp, Opad)[:B, :O]


# --------------------------------------------------------------------------
# Pure-JAX reference (PyTorch semantics, eval mode)
# --------------------------------------------------------------------------
def ref_forward(x, p):
    xt = jnp.transpose(x, (0, 2, 1))            # (B, Cin, L)  (== x.transpose(1,2))
    dn = ("NCH", "OIH", "NCH")
    y = lax.conv_general_dilated(xt, p["conv1_w"], (1,), [(1, 1)], dimension_numbers=dn)
    y = jax.nn.relu(y + p["conv1_b"][None, :, None])
    y = lax.reduce_window(y, -jnp.inf, lax.max, (1, 1, 2), (1, 1, 2), "VALID")
    y = lax.conv_general_dilated(y, p["conv2_w"], (1,), [(1, 1)], dimension_numbers=dn)
    y = jax.nn.relu(y + p["conv2_b"][None, :, None])
    y = lax.reduce_window(y, -jnp.inf, lax.max, (1, 1, 2), (1, 1, 2), "VALID")
    feats = jnp.transpose(y, (0, 2, 1))         # (B, T, C2)
    B, T, _ = feats.shape
    H = p["whh0"].shape[1]

    def cell(x_t, h, wih, whh, bih, bhh):
        gi = x_t @ wih.T + bih
        gh = h @ whh.T + bhh
        r = jax.nn.sigmoid(gi[:, :H] + gh[:, :H])
        z = jax.nn.sigmoid(gi[:, H:2 * H] + gh[:, H:2 * H])
        n = jnp.tanh(gi[:, 2 * H:] + r * gh[:, 2 * H:])
        return (1 - z) * n + z * h

    h0 = jnp.zeros((B, H), jnp.float32)
    h1 = jnp.zeros((B, H), jnp.float32)
    for t in range(T):
        h0 = cell(feats[:, t, :], h0, p["wih0"], p["whh0"], p["bih0"], p["bhh0"])
        h1 = cell(h0, h1, p["wih1"], p["whh1"], p["bih1"], p["bhh1"])
    return h1 @ p["fc_w"].T + p["fc_b"]


# --------------------------------------------------------------------------
if __name__ == "__main__":
    # Module hyper-params
    input_size, num_channels, hidden_size, num_layers, output_size = 4, 8, 32, 2, 5
    C1, C2, H = num_channels, num_channels * 2, hidden_size
    B, L = 2, 16                                 # seq_len divisible by 4

    key = jax.random.PRNGKey(0)
    ks = jax.random.split(key, 16)
    nrm = lambda k, s: (0.1 * jax.random.normal(k, s, dtype=jnp.float32))

    params = {
        "conv1_w": nrm(ks[0], (C1, input_size, 3)), "conv1_b": nrm(ks[1], (C1,)),
        "conv2_w": nrm(ks[2], (C2, C1, 3)),         "conv2_b": nrm(ks[3], (C2,)),
        "wih0": nrm(ks[4], (3 * H, C2)), "whh0": nrm(ks[5], (3 * H, H)),
        "bih0": nrm(ks[6], (3 * H,)),    "bhh0": nrm(ks[7], (3 * H,)),
        "wih1": nrm(ks[8], (3 * H, H)),  "whh1": nrm(ks[9], (3 * H, H)),
        "bih1": nrm(ks[10], (3 * H,)),   "bhh1": nrm(ks[11], (3 * H,)),
        "fc_w": nrm(ks[12], (output_size, H)), "fc_b": nrm(ks[13], (output_size,)),
    }
    x = jax.random.normal(ks[14], (B, L, input_size), dtype=jnp.float32)

    out = jax.block_until_ready(cnn_gru_forward(x, params, output_size))
    ref = jax.block_until_ready(ref_forward(x, params))

    assert out.shape == (B, output_size), out.shape
    assert jnp.allclose(out, ref, atol=1e-4, rtol=1e-4), (out, ref)
    print("KERNEL_OK")
</pallas_src>

<mosaic_0001>
module attributes {stable_mosaic.version = 11 : i64} {
  func.func @cnn_gru_kernel(%arg0: i32, %arg1: memref<1x16x4xf32, #tpu.memory_space<vmem>>, %arg2: memref<12x8xf32, #tpu.memory_space<vmem>>, %arg3: memref<1x8xf32, #tpu.memory_space<vmem>>, %arg4: memref<24x16xf32, #tpu.memory_space<vmem>>, %arg5: memref<1x16xf32, #tpu.memory_space<vmem>>, %arg6: memref<16x96xf32, #tpu.memory_space<vmem>>, %arg7: memref<32x96xf32, #tpu.memory_space<vmem>>, %arg8: memref<1x96xf32, #tpu.memory_space<vmem>>, %arg9: memref<1x32xf32, #tpu.memory_space<vmem>>, %arg10: memref<32x96xf32, #tpu.memory_space<vmem>>, %arg11: memref<32x96xf32, #tpu.memory_space<vmem>>, %arg12: memref<1x96xf32, #tpu.memory_space<vmem>>, %arg13: memref<1x32xf32, #tpu.memory_space<vmem>>, %arg14: memref<32x128xf32, #tpu.memory_space<vmem>>, %arg15: memref<1x128xf32, #tpu.memory_space<vmem>>, %arg16: memref<1x1x128xf32, #tpu.memory_space<vmem>>, %arg17: memref<16x8xf32, #tpu.memory_space<vmem>>, %arg18: memref<8x16xf32, #tpu.memory_space<vmem>>, %arg19: memref<4x96xf32, #tpu.memory_space<vmem>>, %arg20: memref<4x32xf32, #tpu.memory_space<vmem>>) attributes {dimension_semantics = [#tpu.dimension_semantics<parallel>], iteration_bounds = array<i64: 2>, scalar_prefetch = 0 : i64, scratch_operands = 4 : i64, tpu.core_type = #tpu.core_type<tc>, window_params = [{transform_indices = @transform_0, window_bounds = array<i64: 1, 16, 4>}, {pipeline_mode = #tpu.pipeline_mode<synchronous>, transform_indices = @transform_1, window_bounds = array<i64: 12, 8>}, {pipeline_mode = #tpu.pipeline_mode<synchronous>, transform_indices = @transform_2, window_bounds = array<i64: 1, 8>}, {pipeline_mode = #tpu.pipeline_mode<synchronous>, transform_indices = @transform_3, window_bounds = array<i64: 24, 16>}, {pipeline_mode = #tpu.pipeline_mode<synchronous>, transform_indices = @transform_4, window_bounds = array<i64: 1, 16>}, {pipeline_mode = #tpu.pipeline_mode<synchronous>, transform_indices = @transform_5, window_bounds = array<i64: 16, 96>}, {pipeline_mode = #tpu.pipeline_mode<synchronous>, transform_indices = @transform_6, window_bounds = array<i64: 32, 96>}, {pipeline_mode = #tpu.pipeline_mode<synchronous>, transform_indices = @transform_7, window_bounds = array<i64: 1, 96>}, {pipeline_mode = #tpu.pipeline_mode<synchronous>, transform_indices = @transform_8, window_bounds = array<i64: 1, 32>}, {pipeline_mode = #tpu.pipeline_mode<synchronous>, transform_indices = @transform_9, window_bounds = array<i64: 32, 96>}, {pipeline_mode = #tpu.pipeline_mode<synchronous>, transform_indices = @transform_10, window_bounds = array<i64: 32, 96>}, {pipeline_mode = #tpu.pipeline_mode<synchronous>, transform_indices = @transform_11, window_bounds = array<i64: 1, 96>}, {pipeline_mode = #tpu.pipeline_mode<synchronous>, transform_indices = @transform_12, window_bounds = array<i64: 1, 32>}, {pipeline_mode = #tpu.pipeline_mode<synchronous>, transform_indices = @transform_13, window_bounds = array<i64: 32, 128>}, {pipeline_mode = #tpu.pipeline_mode<synchronous>, transform_indices = @transform_14, window_bounds = array<i64: 1, 128>}, {transform_indices = @transform_15, window_bounds = array<i64: 1, 1, 128>}]} {
    %c0 = arith.constant 0 : index
    %c0_0 = arith.constant 0 : index
    %c0_1 = arith.constant 0 : index
    %0 = vector.load %arg1[%c0, %c0_0, %c0_1] : memref<1x16x4xf32, #tpu.memory_space<vmem>>, vector<1x16x4xf32>
    %1 = vector.shape_cast %0 : vector<1x16x4xf32> to vector<16x4xf32>
    %2 = tpu.iota {dimensions = array<i32: 0>} : vector<16x1xi32>
    %c16_i32 = arith.constant 16 : i32
    %c0_i32 = arith.constant 0 : i32
    %3 = arith.cmpi eq, %c16_i32, %c0_i32 : i32
    %c1_i32 = arith.constant 1 : i32
    %4 = arith.select %3, %c1_i32, %c16_i32 : i32
    %5 = vector.broadcast %4 : i32 to vector<16x1xi32>
    %6 = arith.remsi %2, %5 : vector<16x1xi32>
    %c0_i32_2 = arith.constant 0 : i32
    %7 = vector.broadcast %c0_i32_2 : i32 to vector<16x1xi32>
    %8 = arith.cmpi ne, %6, %7 : vector<16x1xi32>
    %c0_i32_3 = arith.constant 0 : i32
    %9 = vector.broadcast %c0_i32_3 : i32 to vector<16x1xi32>
    %10 = arith.cmpi slt, %6, %9 : vector<16x1xi32>
    %c0_i32_4 = arith.constant 0 : i32
    %11 = arith.cmpi slt, %4, %c0_i32_4 : i32
    %12 = vector.broadcast %11 : i1 to vector<16x1xi1>
    %13 = vector.broadcast %12 : vector<16x1xi1> to vector<16x1xi1>
    %14 = arith.xori %10, %13 : vector<16x1xi1>
    %15 = arith.andi %14, %8 : vector<16x1xi1>
    %16 = vector.broadcast %4 : i32 to vector<16x1xi32>
    %17 = arith.addi %6, %16 : vector<16x1xi32>
    %18 = arith.select %15, %17, %6 : vector<16x1xi1>, vector<16x1xi32>
    %c0_i32_5 = arith.constant 0 : i32
    %19 = vector.broadcast %c0_i32_5 : i32 to vector<16x1xi32>
    %20 = arith.cmpi eq, %18, %19 : vector<16x1xi32>
    %c1_i32_6 = arith.constant 1 : i32
    %21 = tpu.dynamic_rotate %1 by %c1_i32_6 dim 0 : vector<16x4xf32>, i32 -> vector<16x4xf32>
    %cst = arith.constant 0.000000e+00 : f32
    %22 = vector.shape_cast %20 : vector<16x1xi1> to vector<16x1xi1>
    %23 = vector.broadcast %22 : vector<16x1xi1> to vector<16x4xi1>
    %24 = vector.broadcast %cst : f32 to vector<16x4xf32>
    %25 = arith.select %23, %24, %21 : vector<16x4xi1>, vector<16x4xf32>
    %c15_i32 = arith.constant 15 : i32
    %26 = vector.broadcast %c15_i32 : i32 to vector<16x1xi32>
    %27 = arith.cmpi eq, %18, %26 : vector<16x1xi32>
    %c15_i32_7 = arith.constant 15 : i32
    %28 = tpu.dynamic_rotate %1 by %c15_i32_7 dim 0 : vector<16x4xf32>, i32 -> vector<16x4xf32>
    %cst_8 = arith.constant 0.000000e+00 : f32
    %29 = vector.shape_cast %27 : vector<16x1xi1> to vector<16x1xi1>
    %30 = vector.broadcast %29 : vector<16x1xi1> to vector<16x4xi1>
    %31 = vector.broadcast %cst_8 : f32 to vector<16x4xf32>
    %32 = arith.select %30, %31, %28 : vector<16x4xi1>, vector<16x4xf32>
    %33 = tpu.concatenate %25, %1, %32 in 1 : vector<16x4xf32>, vector<16x4xf32>, vector<16x4xf32> -> vector<16x12xf32>
    %c0_9 = arith.constant 0 : index
    %c0_10 = arith.constant 0 : index
    %34 = vector.load %arg2[%c0_9, %c0_10] : memref<12x8xf32, #tpu.memory_space<vmem>>, vector<12x8xf32>
    %cst_11 = arith.constant dense<0.000000e+00> : vector<16x8xf32>
    %35 = tpu.matmul %33, %34, %cst_11 {dimension_numbers = #tpu.dot_dimension_numbers<[1], [0], [0], [1], [0, 0, 1, 1], [], []>} : vector<16x12xf32>, vector<12x8xf32>, vector<16x8xf32> -> vector<16x8xf32>
    %c0_12 = arith.constant 0 : index
    %c0_13 = arith.constant 0 : index
    %36 = vector.load %arg3[%c0_12, %c0_13] : memref<1x8xf32, #tpu.memory_space<vmem>>, vector<1x8xf32>
    %37 = vector.broadcast %36 : vector<1x8xf32> to vector<16x8xf32>
    %38 = arith.addf %35, %37 : vector<16x8xf32>
    %cst_14 = arith.constant 0.000000e+00 : f32
    %39 = vector.broadcast %cst_14 : f32 to vector<16x8xf32>
    %40 = arith.maximumf %38, %39 : vector<16x8xf32>
    %c15_i32_15 = arith.constant 15 : i32
    %41 = tpu.dynamic_rotate %40 by %c15_i32_15 dim 0 : vector<16x8xf32>, i32 -> vector<16x8xf32>
    %42 = arith.maximumf %40, %41 : vector<16x8xf32>
    %c0_16 = arith.constant 0 : index
    %c0_17 = arith.constant 0 : index
    %43 = vector.load %arg17[%c0_16, %c0_17] : memref<16x8xf32, #tpu.memory_space<vmem>>, vector<16x8xf32>
    tpu.vector_store %arg17[%c0_16, %c0_17], %42 {strides = array<i32>} : memref<16x8xf32, #tpu.memory_space<vmem>>, vector<16x8xf32>,
    %c0_18 = arith.constant 0 : index
    %c0_19 = arith.constant 0 : index
    %44 = tpu.strided_load %arg17[%c0_18, %c0_19] {strides = array<i32: 2, 1>} : memref<16x8xf32, #tpu.memory_space<vmem>>, vector<8x8xf32>
    %45 = tpu.iota {dimensions = array<i32: 0>} : vector<8x1xi32>
    %c8_i32 = arith.constant 8 : i32
    %c0_i32_20 = arith.constant 0 : i32
    %46 = arith.cmpi eq, %c8_i32, %c0_i32_20 : i32
    %c1_i32_21 = arith.constant 1 : i32
    %47 = arith.select %46, %c1_i32_21, %c8_i32 : i32
    %48 = vector.broadcast %47 : i32 to vector<8x1xi32>
    %49 = arith.remsi %45, %48 : vector<8x1xi32>
    %c0_i32_22 = arith.constant 0 : i32
    %50 = vector.broadcast %c0_i32_22 : i32 to vector<8x1xi32>
    %51 = arith.cmpi ne, %49, %50 : vector<8x1xi32>
    %c0_i32_23 = arith.constant 0 : i32
    %52 = vector.broadcast %c0_i32_23 : i32 to vector<8x1xi32>
    %53 = arith.cmpi slt, %49, %52 : vector<8x1xi32>
    %c0_i32_24 = arith.constant 0 : i32
    %54 = arith.cmpi slt, %47, %c0_i32_24 : i32
    %55 = vector.broadcast %54 : i1 to vector<8x1xi1>
    %56 = vector.broadcast %55 : vector<8x1xi1> to vector<8x1xi1>
    %57 = arith.xori %53, %56 : vector<8x1xi1>
    %58 = arith.andi %57, %51 : vector<8x1xi1>
    %59 = vector.broadcast %47 : i32 to vector<8x1xi32>
    %60 = arith.addi %49, %59 : vector<8x1xi32>
    %61 = arith.select %58, %60, %49 : vector<8x1xi1>, vector<8x1xi32>
    %c0_i32_25 = arith.constant 0 : i32
    %62 = vector.broadcast %c0_i32_25 : i32 to vector<8x1xi32>
    %63 = arith.cmpi eq, %61, %62 : vector<8x1xi32>
    %c1_i32_26 = arith.constant 1 : i32
    %64 = tpu.dynamic_rotate %44 by %c1_i32_26 dim 0 : vector<8x8xf32>, i32 -> vector<8x8xf32>
    %cst_27 = arith.constant 0.000000e+00 : f32
    %65 = vector.shape_cast %63 : vector<8x1xi1> to vector<8x1xi1>
    %66 = vector.broadcast %65 : vector<8x1xi1> to vector<8x8xi1>
    %67 = vector.broadcast %cst_27 : f32 to vector<8x8xf32>
    %68 = arith.select %66, %67, %64 : vector<8x8xi1>, vector<8x8xf32>
    %c7_i32 = arith.constant 7 : i32
    %69 = vector.broadcast %c7_i32 : i32 to vector<8x1xi32>
    %70 = arith.cmpi eq, %61, %69 : vector<8x1xi32>
    %c7_i32_28 = arith.constant 7 : i32
    %71 = tpu.dynamic_rotate %44 by %c7_i32_28 dim 0 : vector<8x8xf32>, i32 -> vector<8x8xf32>
    %cst_29 = arith.constant 0.000000e+00 : f32
    %72 = vector.shape_cast %70 : vector<8x1xi1> to vector<8x1xi1>
    %73 = vector.broadcast %72 : vector<8x1xi1> to vector<8x8xi1>
    %74 = vector.broadcast %cst_29 : f32 to vector<8x8xf32>
    %75 = arith.select %73, %74, %71 : vector<8x8xi1>, vector<8x8xf32>
    %76 = tpu.concatenate %68, %44, %75 in 1 : vector<8x8xf32>, vector<8x8xf32>, vector<8x8xf32> -> vector<8x24xf32>
    %c0_30 = arith.constant 0 : index
    %c0_31 = arith.constant 0 : index
    %77 = vector.load %arg4[%c0_30, %c0_31] : memref<24x16xf32, #tpu.memory_space<vmem>>, vector<24x16xf32>
    %cst_32 = arith.constant dense<0.000000e+00> : vector<8x16xf32>
    %78 = tpu.matmul %76, %77, %cst_32 {dimension_numbers = #tpu.dot_dimension_numbers<[1], [0], [0], [1], [0, 0, 1, 1], [], []>} : vector<8x24xf32>, vector<24x16xf32>, vector<8x16xf32> -> vector<8x16xf32>
    %c0_33 = arith.constant 0 : index
    %c0_34 = arith.constant 0 : index
    %79 = vector.load %arg5[%c0_33, %c0_34] : memref<1x16xf32, #tpu.memory_space<vmem>>, vector<1x16xf32>
    %80 = vector.broadcast %79 : vector<1x16xf32> to vector<8x16xf32>
    %81 = arith.addf %78, %80 : vector<8x16xf32>
    %cst_35 = arith.constant 0.000000e+00 : f32
    %82 = vector.broadcast %cst_35 : f32 to vector<8x16xf32>
    %83 = arith.maximumf %81, %82 : vector<8x16xf32>
    %c7_i32_36 = arith.constant 7 : i32
    %84 = tpu.dynamic_rotate %83 by %c7_i32_36 dim 0 : vector<8x16xf32>, i32 -> vector<8x16xf32>
    %85 = arith.maximumf %83, %84 : vector<8x16xf32>
    %c0_37 = arith.constant 0 : index
    %c0_38 = arith.constant 0 : index
    %86 = vector.load %arg18[%c0_37, %c0_38] : memref<8x16xf32, #tpu.memory_space<vmem>>, vector<8x16xf32>
    tpu.vector_store %arg18[%c0_37, %c0_38], %85 {strides = array<i32>} : memref<8x16xf32, #tpu.memory_space<vmem>>, vector<8x16xf32>,
    %c0_39 = arith.constant 0 : index
    %c0_40 = arith.constant 0 : index
    %87 = tpu.strided_load %arg18[%c0_39, %c0_40] {strides = array<i32: 2, 1>} : memref<8x16xf32, #tpu.memory_space<vmem>>, vector<4x16xf32>
    %c0_41 = arith.constant 0 : index
    %c0_42 = arith.constant 0 : index
    %88 = vector.load %arg6[%c0_41, %c0_42] : memref<16x96xf32, #tpu.memory_space<vmem>>, vector<16x96xf32>
    %cst_43 = arith.constant dense<0.000000e+00> : vector<4x96xf32>
    %89 = tpu.matmul %87, %88, %cst_43 {dimension_numbers = #tpu.dot_dimension_numbers<[1], [0], [0], [1], [0, 0, 1, 1], [], []>} : vector<4x16xf32>, vector<16x96xf32>, vector<4x96xf32> -> vector<4x96xf32>
    %c0_44 = arith.constant 0 : index
    %c0_45 = arith.constant 0 : index
    %90 = vector.load %arg8[%c0_44, %c0_45] : memref<1x96xf32, #tpu.memory_space<vmem>>, vector<1x96xf32>
    %91 = vector.broadcast %90 : vector<1x96xf32> to vector<4x96xf32>
    %92 = arith.addf %89, %91 : vector<4x96xf32>
    %c0_46 = arith.constant 0 : index
    %c0_47 = arith.constant 0 : index
    %93 = vector.load %arg19[%c0_46, %c0_47] : memref<4x96xf32, #tpu.memory_space<vmem>>, vector<4x96xf32>
    tpu.vector_store %arg19[%c0_46, %c0_47], %92 {strides = array<i32>} : memref<4x96xf32, #tpu.memory_space<vmem>>, vector<4x96xf32>,
    %c0_48 = arith.constant 0 : index
    %c0_49 = arith.constant 0 : index
    %94 = vector.load %arg9[%c0_48, %c0_49] : memref<1x32xf32, #tpu.memory_space<vmem>>, vector<1x32xf32>
    %cst_50 = arith.constant 0.000000e+00 : f32
    %95 = vector.broadcast %cst_50 : f32 to vector<1x32xf32>
    %c0_51 = arith.constant 0 : index
    %c0_52 = arith.constant 0 : index
    %96 = vector.load %arg19[%c0_51, %c0_52] : memref<4x96xf32, #tpu.memory_space<vmem>>, vector<1x96xf32>
    %c0_53 = arith.constant 0 : index
    %c0_54 = arith.constant 0 : index
    %97 = vector.load %arg7[%c0_53, %c0_54] : memref<32x96xf32, #tpu.memory_space<vmem>>, vector<32x96xf32>
    %cst_55 = arith.constant dense<0.000000e+00> : vector<1x96xf32>
    %98 = tpu.matmul %95, %97, %cst_55 {dimension_numbers = #tpu.dot_dimension_numbers<[1], [0], [0], [1], [0, 0, 1, 1], [], []>} : vector<1x32xf32>, vector<32x96xf32>, vector<1x96xf32> -> vector<1x96xf32>
    %99 = vector.extract_strided_slice %96 {offsets = [0, 0], sizes = [1, 32], strides = [1, 1]} : vector<1x96xf32> to vector<1x32xf32>
    %100 = vector.extract_strided_slice %98 {offsets = [0, 0], sizes = [1, 32], strides = [1, 1]} : vector<1x96xf32> to vector<1x32xf32>
    %101 = arith.addf %99, %100 : vector<1x32xf32>
    %102 = arith.negf %101 : vector<1x32xf32>
    %103 = math.exp %102 : vector<1x32xf32>
    %cst_56 = arith.constant 1.000000e+00 : f32
    %104 = vector.broadcast %cst_56 : f32 to vector<1x32xf32>
    %105 = arith.addf %104, %103 : vector<1x32xf32>
    %106 = arith.divf %104, %105 : vector<1x32xf32>
    %107 = vector.extract_strided_slice %96 {offsets = [0, 32], sizes = [1, 32], strides = [1, 1]} : vector<1x96xf32> to vector<1x32xf32>
    %108 = vector.extract_strided_slice %98 {offsets = [0, 32], sizes = [1, 32], strides = [1, 1]} : vector<1x96xf32> to vector<1x32xf32>
    %109 = arith.addf %107, %108 : vector<1x32xf32>
    %110 = arith.negf %109 : vector<1x32xf32>
    %111 = math.exp %110 : vector<1x32xf32>
    %cst_57 = arith.constant 1.000000e+00 : f32
    %112 = vector.broadcast %cst_57 : f32 to vector<1x32xf32>
    %113 = arith.addf %112, %111 : vector<1x32xf32>
    %114 = arith.divf %112, %113 : vector<1x32xf32>
    %115 = vector.extract_strided_slice %96 {offsets = [0, 64], sizes = [1, 32], strides = [1, 1]} : vector<1x96xf32> to vector<1x32xf32>
    %116 = vector.extract_strided_slice %98 {offsets = [0, 64], sizes = [1, 32], strides = [1, 1]} : vector<1x96xf32> to vector<1x32xf32>
    %117 = arith.addf %116, %94 : vector<1x32xf32>
    %118 = arith.mulf %106, %117 : vector<1x32xf32>
    %119 = arith.addf %115, %118 : vector<1x32xf32>
    %120 = math.tanh %119 : vector<1x32xf32>
    %cst_58 = arith.constant 1.000000e+00 : f32
    %121 = vector.broadcast %cst_58 : f32 to vector<1x32xf32>
    %122 = arith.subf %121, %114 : vector<1x32xf32>
    %123 = arith.mulf %122, %120 : vector<1x32xf32>
    %124 = arith.mulf %114, %95 : vector<1x32xf32>
    %125 = arith.addf %123, %124 : vector<1x32xf32>
    %c0_59 = arith.constant 0 : index
    %c0_60 = arith.constant 0 : index
    %126 = vector.load %arg20[%c0_59, %c0_60] : memref<4x32xf32, #tpu.memory_space<vmem>>, vector<1x32xf32>
    tpu.vector_store %arg20[%c0_59, %c0_60], %125 {strides = array<i32>} : memref<4x32xf32, #tpu.memory_space<vmem>>, vector<1x32xf32>,
    %c1 = arith.constant 1 : index
    %c0_61 = arith.constant 0 : index
    %127 = vector.load %arg19[%c1, %c0_61] : memref<4x96xf32, #tpu.memory_space<vmem>>, vector<1x96xf32>
    %c0_62 = arith.constant 0 : index
    %c0_63 = arith.constant 0 : index
    %128 = vector.load %arg7[%c0_62, %c0_63] : memref<32x96xf32, #tpu.memory_space<vmem>>, vector<32x96xf32>
    %cst_64 = arith.constant dense<0.000000e+00> : vector<1x96xf32>
    %129 = tpu.matmul %125, %128, %cst_64 {dimension_numbers = #tpu.dot_dimension_numbers<[1], [0], [0], [1], [0, 0, 1, 1], [], []>} : vector<1x32xf32>, vector<32x96xf32>, vector<1x96xf32> -> vector<1x96xf32>
    %130 = vector.extract_strided_slice %127 {offsets = [0, 0], sizes = [1, 32], strides = [1, 1]} : vector<1x96xf32> to vector<1x32xf32>
    %131 = vector.extract_strided_slice %129 {offsets = [0, 0], sizes = [1, 32], strides = [1, 1]} : vector<1x96xf32> to vector<1x32xf32>
    %132 = arith.addf %130, %131 : vector<1x32xf32>
    %133 = arith.negf %132 : vector<1x32xf32>
    %134 = math.exp %133 : vector<1x32xf32>
    %cst_65 = arith.constant 1.000000e+00 : f32
    %135 = vector.broadcast %cst_65 : f32 to vector<1x32xf32>
    %136 = arith.addf %135, %134 : vector<1x32xf32>
    %137 = arith.divf %135, %136 : vector<1x32xf32>
    %138 = vector.extract_strided_slice %127 {offsets = [0, 32], sizes = [1, 32], strides = [1, 1]} : vector<1x96xf32> to vector<1x32xf32>
    %139 = vector.extract_strided_slice %129 {offsets = [0, 32], sizes = [1, 32], strides = [1, 1]} : vector<1x96xf32> to vector<1x32xf32>
    %140 = arith.addf %138, %139 : vector<1x32xf32>
    %141 = arith.negf %140 : vector<1x32xf32>
    %142 = math.exp %141 : vector<1x32xf32>
    %cst_66 = arith.constant 1.000000e+00 : f32
    %143 = vector.broadcast %cst_66 : f32 to vector<1x32xf32>
    %144 = arith.addf %143, %142 : vector<1x32xf32>
    %145 = arith.divf %143, %144 : vector<1x32xf32>
    %146 = vector.extract_strided_slice %127 {offsets = [0, 64], sizes = [1, 32], strides = [1, 1]} : vector<1x96xf32> to vector<1x32xf32>
    %147 = vector.extract_strided_slice %129 {offsets = [0, 64], sizes = [1, 32], strides = [1, 1]} : vector<1x96xf32> to vector<1x32xf32>
    %148 = arith.addf %147, %94 : vector<1x32xf32>
    %149 = arith.mulf %137, %148 : vector<1x32xf32>
    %150 = arith.addf %146, %149 : vector<1x32xf32>
    %151 = math.tanh %150 : vector<1x32xf32>
    %cst_67 = arith.constant 1.000000e+00 : f32
    %152 = vector.broadcast %cst_67 : f32 to vector<1x32xf32>
    %153 = arith.subf %152, %145 : vector<1x32xf32>
    %154 = arith.mulf %153, %151 : vector<1x32xf32>
    %155 = arith.mulf %145, %125 : vector<1x32xf32>
    %156 = arith.addf %154, %155 : vector<1x32xf32>
    %c1_68 = arith.constant 1 : index
    %c0_69 = arith.constant 0 : index
    %157 = vector.load %arg20[%c1_68, %c0_69] : memref<4x32xf32, #tpu.memory_space<vmem>>, vector<1x32xf32>
    tpu.vector_store %arg20[%c1_68, %c0_69], %156 {strides = array<i32>} : memref<4x32xf32, #tpu.memory_space<vmem>>, vector<1x32xf32>,
    %c2 = arith.constant 2 : index
    %c0_70 = arith.constant 0 : index
    %158 = vector.load %arg19[%c2, %c0_70] : memref<4x96xf32, #tpu.memory_space<vmem>>, vector<1x96xf32>
    %c0_71 = arith.constant 0 : index
    %c0_72 = arith.constant 0 : index
    %159 = vector.load %arg7[%c0_71, %c0_72] : memref<32x96xf32, #tpu.memory_space<vmem>>, vector<32x96xf32>
    %cst_73 = arith.constant dense<0.000000e+00> : vector<1x96xf32>
    %160 = tpu.matmul %156, %159, %cst_73 {dimension_numbers = #tpu.dot_dimension_numbers<[1], [0], [0], [1], [0, 0, 1, 1], [], []>} : vector<1x32xf32>, vector<32x96xf32>, vector<1x96xf32> -> vector<1x96xf32>
    %161 = vector.extract_strided_slice %158 {offsets = [0, 0], sizes = [1, 32], strides = [1, 1]} : vector<1x96xf32> to vector<1x32xf32>
    %162 = vector.extract_strided_slice %160 {offsets = [0, 0], sizes = [1, 32], strides = [1, 1]} : vector<1x96xf32> to vector<1x32xf32>
    %163 = arith.addf %161, %162 : vector<1x32xf32>
    %164 = arith.negf %163 : vector<1x32xf32>
    %165 = math.exp %164 : vector<1x32xf32>
    %cst_74 = arith.constant 1.000000e+00 : f32
    %166 = vector.broadcast %cst_74 : f32 to vector<1x32xf32>
    %167 = arith.addf %166, %165 : vector<1x32xf32>
    %168 = arith.divf %166, %167 : vector<1x32xf32>
    %169 = vector.extract_strided_slice %158 {offsets = [0, 32], sizes = [1, 32], strides = [1, 1]} : vector<1x96xf32> to vector<1x32xf32>
    %170 = vector.extract_strided_slice %160 {offsets = [0, 32], sizes = [1, 32], strides = [1, 1]} : vector<1x96xf32> to vector<1x32xf32>
    %171 = arith.addf %169, %170 : vector<1x32xf32>
    %172 = arith.negf %171 : vector<1x32xf32>
    %173 = math.exp %172 : vector<1x32xf32>
    %cst_75 = arith.constant 1.000000e+00 : f32
    %174 = vector.broadcast %cst_75 : f32 to vector<1x32xf32>
    %175 = arith.addf %174, %173 : vector<1x32xf32>
    %176 = arith.divf %174, %175 : vector<1x32xf32>
    %177 = vector.extract_strided_slice %158 {offsets = [0, 64], sizes = [1, 32], strides = [1, 1]} : vector<1x96xf32> to vector<1x32xf32>
    %178 = vector.extract_strided_slice %160 {offsets = [0, 64], sizes = [1, 32], strides = [1, 1]} : vector<1x96xf32> to vector<1x32xf32>
    %179 = arith.addf %178, %94 : vector<1x32xf32>
    %180 = arith.mulf %168, %179 : vector<1x32xf32>
    %181 = arith.addf %177, %180 : vector<1x32xf32>
    %182 = math.tanh %181 : vector<1x32xf32>
    %cst_76 = arith.constant 1.000000e+00 : f32
    %183 = vector.broadcast %cst_76 : f32 to vector<1x32xf32>
    %184 = arith.subf %183, %176 : vector<1x32xf32>
    %185 = arith.mulf %184, %182 : vector<1x32xf32>
    %186 = arith.mulf %176, %156 : vector<1x32xf32>
    %187 = arith.addf %185, %186 : vector<1x32xf32>
    %c2_77 = arith.constant 2 : index
    %c0_78 = arith.constant 0 : index
    %188 = vector.load %arg20[%c2_77, %c0_78] : memref<4x32xf32, #tpu.memory_space<vmem>>, vector<1x32xf32>
    tpu.vector_store %arg20[%c2_77, %c0_78], %187 {strides = array<i32>} : memref<4x32xf32, #tpu.memory_space<vmem>>, vector<1x32xf32>,
    %c3 = arith.constant 3 : index
    %c0_79 = arith.constant 0 : index
    %189 = vector.load %arg19[%c3, %c0_79] : memref<4x96xf32, #tpu.memory_space<vmem>>, vector<1x96xf32>
    %c0_80 = arith.constant 0 : index
    %c0_81 = arith.constant 0 : index
    %190 = vector.load %arg7[%c0_80, %c0_81] : memref<32x96xf32, #tpu.memory_space<vmem>>, vector<32x96xf32>
    %cst_82 = arith.constant dense<0.000000e+00> : vector<1x96xf32>
    %191 = tpu.matmul %187, %190, %cst_82 {dimension_numbers = #tpu.dot_dimension_numbers<[1], [0], [0], [1], [0, 0, 1, 1], [], []>} : vector<1x32xf32>, vector<32x96xf32>, vector<1x96xf32> -> vector<1x96xf32>
    %192 = vector.extract_strided_slice %189 {offsets = [0, 0], sizes = [1, 32], strides = [1, 1]} : vector<1x96xf32> to vector<1x32xf32>
    %193 = vector.extract_strided_slice %191 {offsets = [0, 0], sizes = [1, 32], strides = [1, 1]} : vector<1x96xf32> to vector<1x32xf32>
    %194 = arith.addf %192, %193 : vector<1x32xf32>
    %195 = arith.negf %194 : vector<1x32xf32>
    %196 = math.exp %195 : vector<1x32xf32>
    %cst_83 = arith.constant 1.000000e+00 : f32
    %197 = vector.broadcast %cst_83 : f32 to vector<1x32xf32>
    %198 = arith.addf %197, %196 : vector<1x32xf32>
    %199 = arith.divf %197, %198 : vector<1x32xf32>
    %200 = vector.extract_strided_slice %189 {offsets = [0, 32], sizes = [1, 32], strides = [1, 1]} : vector<1x96xf32> to vector<1x32xf32>
    %201 = vector.extract_strided_slice %191 {offsets = [0, 32], sizes = [1, 32], strides = [1, 1]} : vector<1x96xf32> to vector<1x32xf32>
    %202 = arith.addf %200, %201 : vector<1x32xf32>
    %203 = arith.negf %202 : vector<1x32xf32>
    %204 = math.exp %203 : vector<1x32xf32>
    %cst_84 = arith.constant 1.000000e+00 : f32
    %205 = vector.broadcast %cst_84 : f32 to vector<1x32xf32>
    %206 = arith.addf %205, %204 : vector<1x32xf32>
    %207 = arith.divf %205, %206 : vector<1x32xf32>
    %208 = vector.extract_strided_slice %189 {offsets = [0, 64], sizes = [1, 32], strides = [1, 1]} : vector<1x96xf32> to vector<1x32xf32>
    %209 = vector.extract_strided_slice %191 {offsets = [0, 64], sizes = [1, 32], strides = [1, 1]} : vector<1x96xf32> to vector<1x32xf32>
    %210 = arith.addf %209, %94 : vector<1x32xf32>
    %211 = arith.mulf %199, %210 : vector<1x32xf32>
    %212 = arith.addf %208, %211 : vector<1x32xf32>
    %213 = math.tanh %212 : vector<1x32xf32>
    %cst_85 = arith.constant 1.000000e+00 : f32
    %214 = vector.broadcast %cst_85 : f32 to vector<1x32xf32>
    %215 = arith.subf %214, %207 : vector<1x32xf32>
    %216 = arith.mulf %215, %213 : vector<1x32xf32>
    %217 = arith.mulf %207, %187 : vector<1x32xf32>
    %218 = arith.addf %216, %217 : vector<1x32xf32>
    %c3_86 = arith.constant 3 : index
    %c0_87 = arith.constant 0 : index
    %219 = vector.load %arg20[%c3_86, %c0_87] : memref<4x32xf32, #tpu.memory_space<vmem>>, vector<1x32xf32>
    tpu.vector_store %arg20[%c3_86, %c0_87], %218 {strides = array<i32>} : memref<4x32xf32, #tpu.memory_space<vmem>>, vector<1x32xf32>,
    %c0_88 = arith.constant 0 : index
    %c0_89 = arith.constant 0 : index
    %220 = vector.load %arg20[%c0_88, %c0_89] : memref<4x32xf32, #tpu.memory_space<vmem>>, vector<4x32xf32>
    %c0_90 = arith.constant 0 : index
    %c0_91 = arith.constant 0 : index
    %221 = vector.load %arg10[%c0_90, %c0_91] : memref<32x96xf32, #tpu.memory_space<vmem>>, vector<32x96xf32>
    %cst_92 = arith.constant dense<0.000000e+00> : vector<4x96xf32>
    %222 = tpu.matmul %220, %221, %cst_92 {dimension_numbers = #tpu.dot_dimension_numbers<[1], [0], [0], [1], [0, 0, 1, 1], [], []>} : vector<4x32xf32>, vector<32x96xf32>, vector<4x96xf32> -> vector<4x96xf32>
    %c0_93 = arith.constant 0 : index
    %c0_94 = arith.constant 0 : index
    %223 = vector.load %arg12[%c0_93, %c0_94] : memref<1x96xf32, #tpu.memory_space<vmem>>, vector<1x96xf32>
    %224 = vector.broadcast %223 : vector<1x96xf32> to vector<4x96xf32>
    %225 = arith.addf %222, %224 : vector<4x96xf32>
    %c0_95 = arith.constant 0 : index
    %c0_96 = arith.constant 0 : index
    %226 = vector.load %arg19[%c0_95, %c0_96] : memref<4x96xf32, #tpu.memory_space<vmem>>, vector<4x96xf32>
    tpu.vector_store %arg19[%c0_95, %c0_96], %225 {strides = array<i32>} : memref<4x96xf32, #tpu.memory_space<vmem>>, vector<4x96xf32>,
    %c0_97 = arith.constant 0 : index
    %c0_98 = arith.constant 0 : index
    %227 = vector.load %arg13[%c0_97, %c0_98] : memref<1x32xf32, #tpu.memory_space<vmem>>, vector<1x32xf32>
    %cst_99 = arith.constant 0.000000e+00 : f32
    %228 = vector.broadcast %cst_99 : f32 to vector<1x32xf32>
    %c0_100 = arith.constant 0 : index
    %c0_101 = arith.constant 0 : index
    %229 = vector.load %arg19[%c0_100, %c0_101] : memref<4x96xf32, #tpu.memory_space<vmem>>, vector<1x96xf32>
    %c0_102 = arith.constant 0 : index
    %c0_103 = arith.constant 0 : index
    %230 = vector.load %arg11[%c0_102, %c0_103] : memref<32x96xf32, #tpu.memory_space<vmem>>, vector<32x96xf32>
    %cst_104 = arith.constant dense<0.000000e+00> : vector<1x96xf32>
    %231 = tpu.matmul %228, %230, %cst_104 {dimension_numbers = #tpu.dot_dimension_numbers<[1], [0], [0], [1], [0, 0, 1, 1], [], []>} : vector<1x32xf32>, vector<32x96xf32>, vector<1x96xf32> -> vector<1x96xf32>
    %232 = vector.extract_strided_slice %229 {offsets = [0, 0], sizes = [1, 32], strides = [1, 1]} : vector<1x96xf32> to vector<1x32xf32>
    %233 = vector.extract_strided_slice %231 {offsets = [0, 0], sizes = [1, 32], strides = [1, 1]} : vector<1x96xf32> to vector<1x32xf32>
    %234 = arith.addf %232, %233 : vector<1x32xf32>
    %235 = arith.negf %234 : vector<1x32xf32>
    %236 = math.exp %235 : vector<1x32xf32>
    %cst_105 = arith.constant 1.000000e+00 : f32
    %237 = vector.broadcast %cst_105 : f32 to vector<1x32xf32>
    %238 = arith.addf %237, %236 : vector<1x32xf32>
    %239 = arith.divf %237, %238 : vector<1x32xf32>
    %240 = vector.extract_strided_slice %229 {offsets = [0, 32], sizes = [1, 32], strides = [1, 1]} : vector<1x96xf32> to vector<1x32xf32>
    %241 = vector.extract_strided_slice %231 {offsets = [0, 32], sizes = [1, 32], strides = [1, 1]} : vector<1x96xf32> to vector<1x32xf32>
    %242 = arith.addf %240, %241 : vector<1x32xf32>
    %243 = arith.negf %242 : vector<1x32xf32>
    %244 = math.exp %243 : vector<1x32xf32>
    %cst_106 = arith.constant 1.000000e+00 : f32
    %245 = vector.broadcast %cst_106 : f32 to vector<1x32xf32>
    %246 = arith.addf %245, %244 : vector<1x32xf32>
    %247 = arith.divf %245, %246 : vector<1x32xf32>
    %248 = vector.extract_strided_slice %229 {offsets = [0, 64], sizes = [1, 32], strides = [1, 1]} : vector<1x96xf32> to vector<1x32xf32>
    %249 = vector.extract_strided_slice %231 {offsets = [0, 64], sizes = [1, 32], strides = [1, 1]} : vector<1x96xf32> to vector<1x32xf32>
    %250 = arith.addf %249, %227 : vector<1x32xf32>
    %251 = arith.mulf %239, %250 : vector<1x32xf32>
    %252 = arith.addf %248, %251 : vector<1x32xf32>
    %253 = math.tanh %252 : vector<1x32xf32>
    %cst_107 = arith.constant 1.000000e+00 : f32
    %254 = vector.broadcast %cst_107 : f32 to vector<1x32xf32>
    %255 = arith.subf %254, %247 : vector<1x32xf32>
    %256 = arith.mulf %255, %253 : vector<1x32xf32>
    %257 = arith.mulf %247, %228 : vector<1x32xf32>
    %258 = arith.addf %256, %257 : vector<1x32xf32>
    %c1_108 = arith.constant 1 : index
    %c0_109 = arith.constant 0 : index
    %259 = vector.load %arg19[%c1_108, %c0_109] : memref<4x96xf32, #tpu.memory_space<vmem>>, vector<1x96xf32>
    %c0_110 = arith.constant 0 : index
    %c0_111 = arith.constant 0 : index
    %260 = vector.load %arg11[%c0_110, %c0_111] : memref<32x96xf32, #tpu.memory_space<vmem>>, vector<32x96xf32>
    %cst_112 = arith.constant dense<0.000000e+00> : vector<1x96xf32>
    %261 = tpu.matmul %258, %260, %cst_112 {dimension_numbers = #tpu.dot_dimension_numbers<[1], [0], [0], [1], [0, 0, 1, 1], [], []>} : vector<1x32xf32>, vector<32x96xf32>, vector<1x96xf32> -> vector<1x96xf32>
    %262 = vector.extract_strided_slice %259 {offsets = [0, 0], sizes = [1, 32], strides = [1, 1]} : vector<1x96xf32> to vector<1x32xf32>
    %263 = vector.extract_strided_slice %261 {offsets = [0, 0], sizes = [1, 32], strides = [1, 1]} : vector<1x96xf32> to vector<1x32xf32>
    %264 = arith.addf %262, %263 : vector<1x32xf32>
    %265 = arith.negf %264 : vector<1x32xf32>
    %266 = math.exp %265 : vector<1x32xf32>
    %cst_113 = arith.constant 1.000000e+00 : f32
    %267 = vector.broadcast %cst_113 : f32 to vector<1x32xf32>
    %268 = arith.addf %267, %266 : vector<1x32xf32>
    %269 = arith.divf %267, %268 : vector<1x32xf32>
    %270 = vector.extract_strided_slice %259 {offsets = [0, 32], sizes = [1, 32], strides = [1, 1]} : vector<1x96xf32> to vector<1x32xf32>
    %271 = vector.extract_strided_slice %261 {offsets = [0, 32], sizes = [1, 32], strides = [1, 1]} : vector<1x96xf32> to vector<1x32xf32>
    %272 = arith.addf %270, %271 : vector<1x32xf32>
    %273 = arith.negf %272 : vector<1x32xf32>
    %274 = math.exp %273 : vector<1x32xf32>
    %cst_114 = arith.constant 1.000000e+00 : f32
    %275 = vector.broadcast %cst_114 : f32 to vector<1x32xf32>
    %276 = arith.addf %275, %274 : vector<1x32xf32>
    %277 = arith.divf %275, %276 : vector<1x32xf32>
    %278 = vector.extract_strided_slice %259 {offsets = [0, 64], sizes = [1, 32], strides = [1, 1]} : vector<1x96xf32> to vector<1x32xf32>
    %279 = vector.extract_strided_slice %261 {offsets = [0, 64], sizes = [1, 32], strides = [1, 1]} : vector<1x96xf32> to vector<1x32xf32>
    %280 = arith.addf %279, %227 : vector<1x32xf32>
    %281 = arith.mulf %269, %280 : vector<1x32xf32>
    %282 = arith.addf %278, %281 : vector<1x32xf32>
    %283 = math.tanh %282 : vector<1x32xf32>
    %cst_115 = arith.constant 1.000000e+00 : f32
    %284 = vector.broadcast %cst_115 : f32 to vector<1x32xf32>
    %285 = arith.subf %284, %277 : vector<1x32xf32>
    %286 = arith.mulf %285, %283 : vector<1x32xf32>
    %287 = arith.mulf %277, %258 : vector<1x32xf32>
    %288 = arith.addf %286, %287 : vector<1x32xf32>
    %c2_116 = arith.constant 2 : index
    %c0_117 = arith.constant 0 : index
    %289 = vector.load %arg19[%c2_116, %c0_117] : memref<4x96xf32, #tpu.memory_space<vmem>>, vector<1x96xf32>
    %c0_118 = arith.constant 0 : index
    %c0_119 = arith.constant 0 : index
    %290 = vector.load %arg11[%c0_118, %c0_119] : memref<32x96xf32, #tpu.memory_space<vmem>>, vector<32x96xf32>
    %cst_120 = arith.constant dense<0.000000e+00> : vector<1x96xf32>
    %291 = tpu.matmul %288, %290, %cst_120 {dimension_numbers = #tpu.dot_dimension_numbers<[1], [0], [0], [1], [0, 0, 1, 1], [], []>} : vector<1x32xf32>, vector<32x96xf32>, vector<1x96xf32> -> vector<1x96xf32>
    %292 = vector.extract_strided_slice %289 {offsets = [0, 0], sizes = [1, 32], strides = [1, 1]} : vector<1x96xf32> to vector<1x32xf32>
    %293 = vector.extract_strided_slice %291 {offsets = [0, 0], sizes = [1, 32], strides = [1, 1]} : vector<1x96xf32> to vector<1x32xf32>
    %294 = arith.addf %292, %293 : vector<1x32xf32>
    %295 = arith.negf %294 : vector<1x32xf32>
    %296 = math.exp %295 : vector<1x32xf32>
    %cst_121 = arith.constant 1.000000e+00 : f32
    %297 = vector.broadcast %cst_121 : f32 to vector<1x32xf32>
    %298 = arith.addf %297, %296 : vector<1x32xf32>
    %299 = arith.divf %297, %298 : vector<1x32xf32>
    %300 = vector.extract_strided_slice %289 {offsets = [0, 32], sizes = [1, 32], strides = [1, 1]} : vector<1x96xf32> to vector<1x32xf32>
    %301 = vector.extract_strided_slice %291 {offsets = [0, 32], sizes = [1, 32], strides = [1, 1]} : vector<1x96xf32> to vector<1x32xf32>
    %302 = arith.addf %300, %301 : vector<1x32xf32>
    %303 = arith.negf %302 : vector<1x32xf32>
    %304 = math.exp %303 : vector<1x32xf32>
    %cst_122 = arith.constant 1.000000e+00 : f32
    %305 = vector.broadcast %cst_122 : f32 to vector<1x32xf32>
    %306 = arith.addf %305, %304 : vector<1x32xf32>
    %307 = arith.divf %305, %306 : vector<1x32xf32>
    %308 = vector.extract_strided_slice %289 {offsets = [0, 64], sizes = [1, 32], strides = [1, 1]} : vector<1x96xf32> to vector<1x32xf32>
    %309 = vector.extract_strided_slice %291 {offsets = [0, 64], sizes = [1, 32], strides = [1, 1]} : vector<1x96xf32> to vector<1x32xf32>
    %310 = arith.addf %309, %227 : vector<1x32xf32>
    %311 = arith.mulf %299, %310 : vector<1x32xf32>
    %312 = arith.addf %308, %311 : vector<1x32xf32>
    %313 = math.tanh %312 : vector<1x32xf32>
    %cst_123 = arith.constant 1.000000e+00 : f32
    %314 = vector.broadcast %cst_123 : f32 to vector<1x32xf32>
    %315 = arith.subf %314, %307 : vector<1x32xf32>
    %316 = arith.mulf %315, %313 : vector<1x32xf32>
    %317 = arith.mulf %307, %288 : vector<1x32xf32>
    %318 = arith.addf %316, %317 : vector<1x32xf32>
    %c3_124 = arith.constant 3 : index
    %c0_125 = arith.constant 0 : index
    %319 = vector.load %arg19[%c3_124, %c0_125] : memref<4x96xf32, #tpu.memory_space<vmem>>, vector<1x96xf32>
    %c0_126 = arith.constant 0 : index
    %c0_127 = arith.constant 0 : index
    %320 = vector.load %arg11[%c0_126, %c0_127] : memref<32x96xf32, #tpu.memory_space<vmem>>, vector<32x96xf32>
    %cst_128 = arith.constant dense<0.000000e+00> : vector<1x96xf32>
    %321 = tpu.matmul %318, %320, %cst_128 {dimension_numbers = #tpu.dot_dimension_numbers<[1], [0], [0], [1], [0, 0, 1, 1], [], []>} : vector<1x32xf32>, vector<32x96xf32>, vector<1x96xf32> -> vector<1x96xf32>
    %322 = vector.extract_strided_slice %319 {offsets = [0, 0], sizes = [1, 32], strides = [1, 1]} : vector<1x96xf32> to vector<1x32xf32>
    %323 = vector.extract_strided_slice %321 {offsets = [0, 0], sizes = [1, 32], strides = [1, 1]} : vector<1x96xf32> to vector<1x32xf32>
    %324 = arith.addf %322, %323 : vector<1x32xf32>
    %325 = arith.negf %324 : vector<1x32xf32>
    %326 = math.exp %325 : vector<1x32xf32>
    %cst_129 = arith.constant 1.000000e+00 : f32
    %327 = vector.broadcast %cst_129 : f32 to vector<1x32xf32>
    %328 = arith.addf %327, %326 : vector<1x32xf32>
    %329 = arith.divf %327, %328 : vector<1x32xf32>
    %330 = vector.extract_strided_slice %319 {offsets = [0, 32], sizes = [1, 32], strides = [1, 1]} : vector<1x96xf32> to vector<1x32xf32>
    %331 = vector.extract_strided_slice %321 {offsets = [0, 32], sizes = [1, 32], strides = [1, 1]} : vector<1x96xf32> to vector<1x32xf32>
    %332 = arith.addf %330, %331 : vector<1x32xf32>
    %333 = arith.negf %332 : vector<1x32xf32>
    %334 = math.exp %333 : vector<1x32xf32>
    %cst_130 = arith.constant 1.000000e+00 : f32
    %335 = vector.broadcast %cst_130 : f32 to vector<1x32xf32>
    %336 = arith.addf %335, %334 : vector<1x32xf32>
    %337 = arith.divf %335, %336 : vector<1x32xf32>
    %338 = vector.extract_strided_slice %319 {offsets = [0, 64], sizes = [1, 32], strides = [1, 1]} : vector<1x96xf32> to vector<1x32xf32>
    %339 = vector.extract_strided_slice %321 {offsets = [0, 64], sizes = [1, 32], strides = [1, 1]} : vector<1x96xf32> to vector<1x32xf32>
    %340 = arith.addf %339, %227 : vector<1x32xf32>
    %341 = arith.mulf %329, %340 : vector<1x32xf32>
    %342 = arith.addf %338, %341 : vector<1x32xf32>
    %343 = math.tanh %342 : vector<1x32xf32>
    %cst_131 = arith.constant 1.000000e+00 : f32
    %344 = vector.broadcast %cst_131 : f32 to vector<1x32xf32>
    %345 = arith.subf %344, %337 : vector<1x32xf32>
    %346 = arith.mulf %345, %343 : vector<1x32xf32>
    %347 = arith.mulf %337, %318 : vector<1x32xf32>
    %348 = arith.addf %346, %347 : vector<1x32xf32>
    %c0_132 = arith.constant 0 : index
    %c0_133 = arith.constant 0 : index
    %349 = vector.load %arg14[%c0_132, %c0_133] : memref<32x128xf32, #tpu.memory_space<vmem>>, vector<32x128xf32>
    %cst_134 = arith.constant dense<0.000000e+00> : vector<1x128xf32>
    %350 = tpu.matmul %348, %349, %cst_134 {dimension_numbers = #tpu.dot_dimension_numbers<[1], [0], [0], [1], [0, 0, 1, 1], [], []>} : vector<1x32xf32>, vector<32x128xf32>, vector<1x128xf32> -> vector<1x128xf32>
    %c0_135 = arith.constant 0 : index
    %c0_136 = arith.constant 0 : index
    %351 = vector.load %arg15[%c0_135, %c0_136] : memref<1x128xf32, #tpu.memory_space<vmem>>, vector<1x128xf32>
    %352 = arith.addf %350, %351 : vector<1x128xf32>
    %c0_137 = arith.constant 0 : index
    %c0_138 = arith.constant 0 : index
    %c0_139 = arith.constant 0 : index
    %353 = vector.load %arg16[%c0_137, %c0_138, %c0_139] : memref<1x1x128xf32, #tpu.memory_space<vmem>>, vector<1x1x128xf32>
    %354 = vector.shape_cast %353 : vector<1x1x128xf32> to vector<1x128xf32>
    %355 = vector.shape_cast %352 : vector<1x128xf32> to vector<1x1x128xf32>
    tpu.vector_store %arg16[%c0_137, %c0_138, %c0_139], %355 {strides = array<i32>} : memref<1x1x128xf32, #tpu.memory_space<vmem>>, vector<1x1x128xf32>,
    return
  }
  func.func @transform_0(%arg0: i32) -> (i32, i32, i32) {
    %c0_i32 = arith.constant 0 : i32
    %c0_i32_0 = arith.constant 0 : i32
    %c0_i32_1 = arith.constant 0 : i32
    return %arg0, %c0_i32, %c0_i32_0 : i32, i32, i32
  }
  func.func @transform_1(%arg0: i32) -> (i32, i32) {
    %c0_i32 = arith.constant 0 : i32
    %c0_i32_0 = arith.constant 0 : i32
    %c0_i32_1 = arith.constant 0 : i32
    return %c0_i32, %c0_i32_0 : i32, i32
  }
  func.func @transform_2(%arg0: i32) -> (i32, i32) {
    %c0_i32 = arith.constant 0 : i32
    %c0_i32_0 = arith.constant 0 : i32
    %c0_i32_1 = arith.constant 0 : i32
    return %c0_i32, %c0_i32_0 : i32, i32
  }
  func.func @transform_3(%arg0: i32) -> (i32, i32) {
    %c0_i32 = arith.constant 0 : i32
    %c0_i32_0 = arith.constant 0 : i32
    %c0_i32_1 = arith.constant 0 : i32
    return %c0_i32, %c0_i32_0 : i32, i32
  }
  func.func @transform_4(%arg0: i32) -> (i32, i32) {
    %c0_i32 = arith.constant 0 : i32
    %c0_i32_0 = arith.constant 0 : i32
    %c0_i32_1 = arith.constant 0 : i32
    return %c0_i32, %c0_i32_0 : i32, i32
  }
  func.func @transform_5(%arg0: i32) -> (i32, i32) {
    %c0_i32 = arith.constant 0 : i32
    %c0_i32_0 = arith.constant 0 : i32
    %c0_i32_1 = arith.constant 0 : i32
    return %c0_i32, %c0_i32_0 : i32, i32
  }
  func.func @transform_6(%arg0: i32) -> (i32, i32) {
    %c0_i32 = arith.constant 0 : i32
    %c0_i32_0 = arith.constant 0 : i32
    %c0_i32_1 = arith.constant 0 : i32
    return %c0_i32, %c0_i32_0 : i32, i32
  }
  func.func @transform_7(%arg0: i32) -> (i32, i32) {
    %c0_i32 = arith.constant 0 : i32
    %c0_i32_0 = arith.constant 0 : i32
    %c0_i32_1 = arith.constant 0 : i32
    return %c0_i32, %c0_i32_0 : i32, i32
  }
  func.func @transform_8(%arg0: i32) -> (i32, i32) {
    %c0_i32 = arith.constant 0 : i32
    %c0_i32_0 = arith.constant 0 : i32
    %c0_i32_1 = arith.constant 0 : i32
    return %c0_i32, %c0_i32_0 : i32, i32
  }
  func.func @transform_9(%arg0: i32) -> (i32, i32) {
    %c0_i32 = arith.constant 0 : i32
    %c0_i32_0 = arith.constant 0 : i32
    %c0_i32_1 = arith.constant 0 : i32
    return %c0_i32, %c0_i32_0 : i32, i32
  }
  func.func @transform_10(%arg0: i32) -> (i32, i32) {
    %c0_i32 = arith.constant 0 : i32
    %c0_i32_0 = arith.constant 0 : i32
    %c0_i32_1 = arith.constant 0 : i32
    return %c0_i32, %c0_i32_0 : i32, i32
  }
  func.func @transform_11(%arg0: i32) -> (i32, i32) {
    %c0_i32 = arith.constant 0 : i32
    %c0_i32_0 = arith.constant 0 : i32
    %c0_i32_1 = arith.constant 0 : i32
    return %c0_i32, %c0_i32_0 : i32, i32
  }
  func.func @transform_12(%arg0: i32) -> (i32, i32) {
    %c0_i32 = arith.constant 0 : i32
    %c0_i32_0 = arith.constant 0 : i32
    %c0_i32_1 = arith.constant 0 : i32
    return %c0_i32, %c0_i32_0 : i32, i32
  }
  func.func @transform_13(%arg0: i32) -> (i32, i32) {
    %c0_i32 = arith.constant 0 : i32
    %c0_i32_0 = arith.constant 0 : i32
    %c0_i32_1 = arith.constant 0 : i32
    return %c0_i32, %c0_i32_0 : i32, i32
  }
  func.func @transform_14(%arg0: i32) -> (i32, i32) {
    %c0_i32 = arith.constant 0 : i32
    %c0_i32_0 = arith.constant 0 : i32
    %c0_i32_1 = arith.constant 0 : i32
    return %c0_i32, %c0_i32_0 : i32, i32
  }
  func.func @transform_15(%arg0: i32) -> (i32, i32, i32) {
    %c0_i32 = arith.constant 0 : i32
    %c0_i32_0 = arith.constant 0 : i32
    %c0_i32_1 = arith.constant 0 : i32
    return %arg0, %c0_i32, %c0_i32_0 : i32, i32, i32
  }
}

</mosaic_0001>

<llo_original>
// kernel: tpu_custom_call.1
$region0: #{tpu_custom_call.1}
  #allocation0 [shape = 'u32[]', space=smem, size = 0x4, offset = 0x4, fixed_abs, tag = 'smem constant byte address 0x4 - core index']
  #allocation1 [shape = 'u32[72,128]{1,0:T(1,128)}', space=vmem, size = 0x9000, scoped, tag = 'internal scratch']
  #allocation2 [shape = 'f32[16,8]{1,0:T(8,128)}', space=vmem, size = 0x2000, scoped, tag = 'scratch operand']
  #allocation3 [shape = 'f32[8,16]{1,0:T(8,128)}', space=vmem, size = 0x1000, scoped, tag = 'scratch operand']
  #allocation4 [shape = 'f32[4,96]{1,0:T(4,128)}', space=vmem, size = 0x800, scoped, tag = 'scratch operand']
  #allocation5 [shape = 'f32[4,32]{1,0:T(4,128)}', space=vmem, size = 0x800, scoped, tag = 'scratch operand']
  %s0 = inlined_call_operand.vmem [shape: f32[2,16,4], index: 0, kind: input, shape index: {}]
  %s1 = inlined_call_operand.vmem [shape: f32[12,8], index: 1, kind: input, shape index: {}]
  %s2 = inlined_call_operand.vmem [shape: f32[1,8], index: 2, kind: input, shape index: {}]
  %s3 = inlined_call_operand.vmem [shape: f32[24,16], index: 3, kind: input, shape index: {}]
  %s4 = inlined_call_operand.vmem [shape: f32[1,16], index: 4, kind: input, shape index: {}]
  %s5 = inlined_call_operand.vmem [shape: f32[16,96], index: 5, kind: input, shape index: {}]
  %s6 = inlined_call_operand.vmem [shape: f32[32,96], index: 6, kind: input, shape index: {}]
  %s7 = inlined_call_operand.vmem [shape: f32[1,96], index: 7, kind: input, shape index: {}]
  %s8 = inlined_call_operand.vmem [shape: f32[1,32], index: 8, kind: input, shape index: {}]
  %s9 = inlined_call_operand.vmem [shape: f32[32,96], index: 9, kind: input, shape index: {}]
  %s10 = inlined_call_operand.hbm [shape: f32[32,96], index: 10, kind: input, shape index: {}]
  %s11 = inlined_call_operand.vmem [shape: f32[1,96], index: 11, kind: input, shape index: {}]
  %s12 = inlined_call_operand.vmem [shape: f32[1,32], index: 12, kind: input, shape index: {}]
  %s13 = inlined_call_operand.hbm [shape: f32[32,128], index: 13, kind: input, shape index: {}]
  %s14 = inlined_call_operand.vmem [shape: f32[1,128], index: 14, kind: input, shape index: {}]
  %s15 = inlined_call_operand.hbm [shape: f32[2,1,128], index: 15, kind: output, shape index: {}]
  %s16 = sld [smem:[#allocation0]]
  $region101: #{tpu_custom_call.1} parent=0
    _
  %s18 = ssub.s32 1, %s16
  %s19 = scalar_select 0, %s18, %s16
  $region1: #{tpu_custom_call.1} parent=0
    #allocation6 [shape = 'u8[16384]{0}', space=vmem, size = 0x4000, scoped, tag = 'input window, operand 10, single buffered']
    #allocation7 [shape = 's32[2]{0}', space=sflag, size = 0x8, scoped, tag = 'scoped memory for tpu_custom_call.1']
    #allocation8 [shape = 's32[2]{0}', space=sflag, size = 0x8, scoped, tag = 'scoped memory for tpu_custom_call.1']
    #allocation9 [shape = 'u8[16384]{0}', space=vmem, size = 0x4000, scoped, tag = 'input window, operand 13, single buffered']
    #allocation10 [shape = 's32[1]{0}', space=sflag, size = 0x4, scoped, tag = 'scoped memory for tpu_custom_call.1']
    #allocation11 [shape = 'u8[1024]{0}', space=vmem, size = 0x400, scoped, tag = 'output window, operand 0']
    %20 = vsyncpa [#allocation7], 0
    %21 = vsyncpa [#allocation10], 0
    %22 = vsyncpa [#allocation8], 0
    %s23 = scalar_lea.sflag [#allocation8], 1
    %24 = vsyncpa %s23, 0
    loop: start=0, step=1, limit=4
    $region2: #{tpu_custom_call.1} parent=1 // loop_pre_header
      _
    $region3: #{tpu_custom_call.1} parent=1 // loop_header
      %s26 = sphi 0, %s30
      %p27 = scmp.ge.s32.totalorder %s26, 4
      %s36 = sphi 0, %s38
      %s39 = sphi 0, %s36
      %s40 = sphi 0, %s39
      %s56 = sphi 0, %s40
      %s60 = sphi 0, %s60
      %s62 = sphi 0, %s60
      %s63 = sphi 0, %s62
      %s77 = sphi 0, %s63
      %s81 = sphi 0, %s81
      %s83 = sphi 0, %s81
      %s84 = sphi 0, %s83
      %s98 = sphi 0, %s84
      %s102 = sphi 0, %s102
      %s104 = sphi 0, %s102
      %s105 = sphi 0, %s104
      %s119 = sphi 0, %s105
      %s123 = sphi 0, %s123
      %s125 = sphi 0, %s123
      %s126 = sphi 0, %s125
      %s140 = sphi 0, %s126
      %s144 = sphi 0, %s144
      %s146 = sphi 0, %s144
      %s147 = sphi 0, %s146
      %s161 = sphi 0, %s147
      %s165 = sphi 0, %s165
      %s167 = sphi 0, %s165
      %s168 = sphi 0, %s167
      %s182 = sphi 0, %s168
      %s186 = sphi 0, %s186
      %s188 = sphi 0, %s186
      %s189 = sphi 0, %s188
      %s203 = sphi 0, %s189
      %s207 = sphi 0, %s207
      %s209 = sphi 0, %s207
      %s210 = sphi 0, %s209
      %s224 = sphi 0, %s210
      %s228 = sphi 0, %s228
      %s230 = sphi 0, %s228
      %s231 = sphi 0, %s230
      %s245 = sphi 0, %s231
      %s249 = sphi 0, %s249
      %s251 = sphi 0, %s249
      %s252 = sphi 0, %s251
      %s266 = sphi 0, %s252
      %s270 = sphi 0, %s270
      %s272 = sphi 0, %s270
      %s273 = sphi 0, %s272
      %s287 = sphi 0, %s273
      %s291 = sphi 0, %s291
      %s293 = sphi 0, %s291
      %s294 = sphi 0, %s293
      %s308 = sphi 0, %s294
      %s312 = sphi 0, %s312
      %s314 = sphi 0, %s312
      %s315 = sphi 0, %s314
      %s329 = sphi 0, %s315
      %s333 = sphi 0, %s333
      %s335 = sphi 0, %s333
      %s336 = sphi 0, %s335
      %s350 = sphi 0, %s336
      %s356 = sphi 0, %s358
      %s359 = sphi 0, %s356
      %s360 = sphi 0, %s359
      %s376 = sphi 0, %s360
    $region4: #{tpu_custom_call.1} parent=1 // loop_header_branch
      %29 = sbr.rel (%p27) target = $region8
    $region5: #{tpu_custom_call.1} parent=1 // loop_body
      %s31 = ssub.s32 %s26, 1
      %s32 = ssub.s32 %s26, 2
      %s33 = sadd.s32 %s26, 1
      %s34 = ssub.s32 %s26, %s33
      %p35 = scmp.eq.s32.totalorder %s34, 0
      %s37 = sadd.s32 %s36, 1
      %s38 = scalar_select %p35, %s36, %s37
      %p41 = pneg %p35
      %p42 = scmp.eq.s32.totalorder %s26, 1
      %p43 = por %p41, %p42
      %p44 = scmp.ne.s32.totalorder %s36, %s39
      %p45 = scmp.eq.s32.totalorder %s26, 0
      %p46 = por %p44, %p45
      %p47 = scmp.ne.s32.totalorder %s36, %s39
      %p48 = scmp.eq.s32.totalorder %s31, 1
      %p49 = por %p47, %p48
      %p50 = scmp.ne.s32.totalorder %s39, %s40
      %p51 = scmp.eq.s32.totalorder %s31, 0
      %p52 = por %p50, %p51
      %p53 = scmp.ne.s32.totalorder %s39, %s40
      %p54 = scmp.eq.s32.totalorder %s32, 1
      %p55 = por %p53, %p54
      %p57 = scmp.ne.s32.totalorder %s40, %s56
      %p58 = scmp.eq.s32.totalorder %s32, 0
      %p59 = por %p57, %p58
      %s61 = sadd.s32 %s60, 1
      %p64 = scmp.eq.s32.totalorder %s26, 1
      %p65 = scmp.ne.s32.totalorder %s60, %s62
      %p66 = scmp.eq.s32.totalorder %s26, 0
      %p67 = por %p65, %p66
      %p68 = scmp.ne.s32.totalorder %s60, %s62
      %p69 = scmp.eq.s32.totalorder %s31, 1
      %p70 = por %p68, %p69
      %p71 = scmp.ne.s32.totalorder %s62, %s63
      %p72 = scmp.eq.s32.totalorder %s31, 0
      %p73 = por %p71, %p72
      %p74 = scmp.ne.s32.totalorder %s62, %s63
      %p75 = scmp.eq.s32.totalorder %s32, 1
      %p76 = por %p74, %p75
      %p78 = scmp.ne.s32.totalorder %s63, %s77
      %p79 = scmp.eq.s32.totalorder %s32, 0
      %p80 = por %p78, %p79
      %s82 = sadd.s32 %s81, 1
      %p85 = scmp.eq.s32.totalorder %s26, 1
      %p86 = scmp.ne.s32.totalorder %s81, %s83
      %p87 = scmp.eq.s32.totalorder %s26, 0
      %p88 = por %p86, %p87
      %p89 = scmp.ne.s32.totalorder %s81, %s83
      %p90 = scmp.eq.s32.totalorder %s31, 1
      %p91 = por %p89, %p90
      %p92 = scmp.ne.s32.totalorder %s83, %s84
      %p93 = scmp.eq.s32.totalorder %s31, 0
      %p94 = por %p92, %p93
      %p95 = scmp.ne.s32.totalorder %s83, %s84
      %p96 = scmp.eq.s32.totalorder %s32, 1
      %p97 = por %p95, %p96
      %p99 = scmp.ne.s32.totalorder %s84, %s98
      %p100 = scmp.eq.s32.totalorder %s32, 0
      %p101 = por %p99, %p100
      %s103 = sadd.s32 %s102, 1
      %p106 = scmp.eq.s32.totalorder %s26, 1
      %p107 = scmp.ne.s32.totalorder %s102, %s104
      %p108 = scmp.eq.s32.totalorder %s26, 0
      %p109 = por %p107, %p108
      %p110 = scmp.ne.s32.totalorder %s102, %s104
      %p111 = scmp.eq.s32.totalorder %s31, 1
      %p112 = por %p110, %p111
      %p113 = scmp.ne.s32.totalorder %s104, %s105
      %p114 = scmp.eq.s32.totalorder %s31, 0
      %p115 = por %p113, %p114
      %p116 = scmp.ne.s32.totalorder %s104, %s105
      %p117 = scmp.eq.s32.totalorder %s32, 1
      %p118 = por %p116, %p117
      %p120 = scmp.ne.s32.totalorder %s105, %s119
      %p121 = scmp.eq.s32.totalorder %s32, 0
      %p122 = por %p120, %p121
      %s124 = sadd.s32 %s123, 1
      %p127 = scmp.eq.s32.totalorder %s26, 1
      %p128 = scmp.ne.s32.totalorder %s123, %s125
      %p129 = scmp.eq.s32.totalorder %s26, 0
      %p130 = por %p128, %p129
      %p131 = scmp.ne.s32.totalorder %s123, %s125
      %p132 = scmp.eq.s32.totalorder %s31, 1
      %p133 = por %p131, %p132
      %p134 = scmp.ne.s32.totalorder %s125, %s126
      %p135 = scmp.eq.s32.totalorder %s31, 0
      %p136 = por %p134, %p135
      %p137 = scmp.ne.s32.totalorder %s125, %s126
      %p138 = scmp.eq.s32.totalorder %s32, 1
      %p139 = por %p137, %p138
      %p141 = scmp.ne.s32.totalorder %s126, %s140
      %p142 = scmp.eq.s32.totalorder %s32, 0
      %p143 = por %p141, %p142
      %s145 = sadd.s32 %s144, 1
      %p148 = scmp.eq.s32.totalorder %s26, 1
      %p149 = scmp.ne.s32.totalorder %s144, %s146
      %p150 = scmp.eq.s32.totalorder %s26, 0
      %p151 = por %p149, %p150
      %p152 = scmp.ne.s32.totalorder %s144, %s146
      %p153 = scmp.eq.s32.totalorder %s31, 1
      %p154 = por %p152, %p153
      %p155 = scmp.ne.s32.totalorder %s146, %s147
      %p156 = scmp.eq.s32.totalorder %s31, 0
      %p157 = por %p155, %p156
      %p158 = scmp.ne.s32.totalorder %s146, %s147
      %p159 = scmp.eq.s32.totalorder %s32, 1
      %p160 = por %p158, %p159
      %p162 = scmp.ne.s32.totalorder %s147, %s161
      %p163 = scmp.eq.s32.totalorder %s32, 0
      %p164 = por %p162, %p163
      %s166 = sadd.s32 %s165, 1
      %p169 = scmp.eq.s32.totalorder %s26, 1
      %p170 = scmp.ne.s32.totalorder %s165, %s167
      %p171 = scmp.eq.s32.totalorder %s26, 0
      %p172 = por %p170, %p171
      %p173 = scmp.ne.s32.totalorder %s165, %s167
      %p174 = scmp.eq.s32.totalorder %s31, 1
      %p175 = por %p173, %p174
      %p176 = scmp.ne.s32.totalorder %s167, %s168
      %p177 = scmp.eq.s32.totalorder %s31, 0
      %p178 = por %p176, %p177
      %p179 = scmp.ne.s32.totalorder %s167, %s168
      %p180 = scmp.eq.s32.totalorder %s32, 1
      %p181 = por %p179, %p180
      %p183 = scmp.ne.s32.totalorder %s168, %s182
      %p184 = scmp.eq.s32.totalorder %s32, 0
      %p185 = por %p183, %p184
      %s187 = sadd.s32 %s186, 1
      %p190 = scmp.eq.s32.totalorder %s26, 1
      %p191 = scmp.ne.s32.totalorder %s186, %s188
      %p192 = scmp.eq.s32.totalorder %s26, 0
      %p193 = por %p191, %p192
      %p194 = scmp.ne.s32.totalorder %s186, %s188
      %p195 = scmp.eq.s32.totalorder %s31, 1
      %p196 = por %p194, %p195
      %p197 = scmp.ne.s32.totalorder %s188, %s189
      %p198 = scmp.eq.s32.totalorder %s31, 0
      %p199 = por %p197, %p198
      %p200 = scmp.ne.s32.totalorder %s188, %s189
      %p201 = scmp.eq.s32.totalorder %s32, 1
      %p202 = por %p200, %p201
      %p204 = scmp.ne.s32.totalorder %s189, %s203
      %p205 = scmp.eq.s32.totalorder %s32, 0
      %p206 = por %p204, %p205
      %s208 = sadd.s32 %s207, 1
      %p211 = scmp.eq.s32.totalorder %s26, 1
      %p212 = scmp.ne.s32.totalorder %s207, %s209
      %p213 = scmp.eq.s32.totalorder %s26, 0
      %p214 = por %p212, %p213
      %p215 = scmp.ne.s32.totalorder %s207, %s209
      %p216 = scmp.eq.s32.totalorder %s31, 1
      %p217 = por %p215, %p216
      %p218 = scmp.ne.s32.totalorder %s209, %s210
      %p219 = scmp.eq.s32.totalorder %s31, 0
      %p220 = por %p218, %p219
      %p221 = scmp.ne.s32.totalorder %s209, %s210
      %p222 = scmp.eq.s32.totalorder %s32, 1
      %p223 = por %p221, %p222
      %p225 = scmp.ne.s32.totalorder %s210, %s224
      %p226 = scmp.eq.s32.totalorder %s32, 0
      %p227 = por %p225, %p226
      %s229 = sadd.s32 %s228, 1
      %p232 = scmp.eq.s32.totalorder %s26, 1
      %p233 = scmp.ne.s32.totalorder %s228, %s230
      %p234 = scmp.eq.s32.totalorder %s26, 0
      %p235 = por %p233, %p234
      %p236 = scmp.ne.s32.totalorder %s228, %s230
      %p237 = scmp.eq.s32.totalorder %s31, 1
      %p238 = por %p236, %p237
      %p239 = scmp.ne.s32.totalorder %s230, %s231
      %p240 = scmp.eq.s32.totalorder %s31, 0
      %p241 = por %p239, %p240
      %p242 = scmp.ne.s32.totalorder %s230, %s231
      %p243 = scmp.eq.s32.totalorder %s32, 1
      %p244 = por %p242, %p243
      %p246 = scmp.ne.s32.totalorder %s231, %s245
      %p247 = scmp.eq.s32.totalorder %s32, 0
      %p248 = por %p246, %p247
      %s250 = sadd.s32 %s249, 1
      %p253 = scmp.eq.s32.totalorder %s26, 1
      %p254 = scmp.ne.s32.totalorder %s249, %s251
      %p255 = scmp.eq.s32.totalorder %s26, 0
      %p256 = por %p254, %p255
      %p257 = scmp.ne.s32.totalorder %s249, %s251
      %p258 = scmp.eq.s32.totalorder %s31, 1
      %p259 = por %p257, %p258
      %p260 = scmp.ne.s32.totalorder %s251, %s252
      %p261 = scmp.eq.s32.totalorder %s31, 0
      %p262 = por %p260, %p261
      %p263 = scmp.ne.s32.totalorder %s251, %s252
      %p264 = scmp.eq.s32.totalorder %s32, 1
      %p265 = por %p263, %p264
      %p267 = scmp.ne.s32.totalorder %s252, %s266
      %p268 = scmp.eq.s32.totalorder %s32, 0
      %p269 = por %p267, %p268
      %s271 = sadd.s32 %s270, 1
      %p274 = scmp.eq.s32.totalorder %s26, 1
      %p275 = scmp.ne.s32.totalorder %s270, %s272
      %p276 = scmp.eq.s32.totalorder %s26, 0
      %p277 = por %p275, %p276
      %p278 = scmp.ne.s32.totalorder %s270, %s272
      %p279 = scmp.eq.s32.totalorder %s31, 1
      %p280 = por %p278, %p279
      %p281 = scmp.ne.s32.totalorder %s272, %s273
      %p282 = scmp.eq.s32.totalorder %s31, 0
      %p283 = por %p281, %p282
      %p284 = scmp.ne.s32.totalorder %s272, %s273
      %p285 = scmp.eq.s32.totalorder %s32, 1
      %p286 = por %p284, %p285
      %p288 = scmp.ne.s32.totalorder %s273, %s287
      %p289 = scmp.eq.s32.totalorder %s32, 0
      %p290 = por %p288, %p289
      %s292 = sadd.s32 %s291, 1
      %p295 = scmp.eq.s32.totalorder %s26, 1
      %p296 = scmp.ne.s32.totalorder %s291, %s293
      %p297 = scmp.eq.s32.totalorder %s26, 0
      %p298 = por %p296, %p297
      %p299 = scmp.ne.s32.totalorder %s291, %s293
      %p300 = scmp.eq.s32.totalorder %s31, 1
      %p301 = por %p299, %p300
      %p302 = scmp.ne.s32.totalorder %s293, %s294
      %p303 = scmp.eq.s32.totalorder %s31, 0
      %p304 = por %p302, %p303
      %p305 = scmp.ne.s32.totalorder %s293, %s294
      %p306 = scmp.eq.s32.totalorder %s32, 1
      %p307 = por %p305, %p306
      %p309 = scmp.ne.s32.totalorder %s294, %s308
      %p310 = scmp.eq.s32.totalorder %s32, 0
      %p311 = por %p309, %p310
      %s313 = sadd.s32 %s312, 1
      %p316 = scmp.eq.s32.totalorder %s26, 1
      %p317 = scmp.ne.s32.totalorder %s312, %s314
      %p318 = scmp.eq.s32.totalorder %s26, 0
      %p319 = por %p317, %p318
      %p320 = scmp.ne.s32.totalorder %s312, %s314
      %p321 = scmp.eq.s32.totalorder %s31, 1
      %p322 = por %p320, %p321
      %p323 = scmp.ne.s32.totalorder %s314, %s315
      %p324 = scmp.eq.s32.totalorder %s31, 0
      %p325 = por %p323, %p324
      %p326 = scmp.ne.s32.totalorder %s314, %s315
      %p327 = scmp.eq.s32.totalorder %s32, 1
      %p328 = por %p326, %p327
      %p330 = scmp.ne.s32.totalorder %s315, %s329
      %p331 = scmp.eq.s32.totalorder %s32, 0
      %p332 = por %p330, %p331
      %s334 = sadd.s32 %s333, 1
      %p337 = scmp.eq.s32.totalorder %s26, 1
      %p338 = scmp.ne.s32.totalorder %s333, %s335
      %p339 = scmp.eq.s32.totalorder %s26, 0
      %p340 = por %p338, %p339
      %p341 = scmp.ne.s32.totalorder %s333, %s335
      %p342 = scmp.eq.s32.totalorder %s31, 1
      %p343 = por %p341, %p342
      %p344 = scmp.ne.s32.totalorder %s335, %s336
      %p345 = scmp.eq.s32.totalorder %s31, 0
      %p346 = por %p344, %p345
      %p347 = scmp.ne.s32.totalorder %s335, %s336
      %p348 = scmp.eq.s32.totalorder %s32, 1
      %p349 = por %p347, %p348
      %p351 = scmp.ne.s32.totalorder %s336, %s350
      %p352 = scmp.eq.s32.totalorder %s32, 0
      %p353 = por %p351, %p352
      %s354 = ssub.s32 %s26, %s33
      %p355 = scmp.eq.s32.totalorder %s354, 0
      %s357 = sadd.s32 %s356, 1
      %s358 = scalar_select %p355, %s356, %s357
      %p361 = pneg %p355
      %p362 = scmp.eq.s32.totalorder %s26, 1
      %p363 = por %p361, %p362
      %p364 = scmp.ne.s32.totalorder %s356, %s359
      %p365 = scmp.eq.s32.totalorder %s26, 0
      %p366 = por %p364, %p365
      %p367 = scmp.ne.s32.totalorder %s356, %s359
      %p368 = scmp.eq.s32.totalorder %s31, 1
      %p369 = por %p367, %p368
      %p370 = scmp.ne.s32.totalorder %s359, %s360
      %p371 = scmp.eq.s32.totalorder %s31, 0
      %p372 = por %p370, %p371
      %p373 = scmp.ne.s32.totalorder %s359, %s360
      %p374 = scmp.eq.s32.totalorder %s32, 1
      %p375 = por %p373, %p374
      %p377 = scmp.ne.s32.totalorder %s360, %s376
      %p378 = scmp.eq.s32.totalorder %s32, 0
      %p379 = por %p377, %p378
      %p380 = scmp.le.s32.totalorder 1, %s26
      %p381 = scmp.lt.s32.totalorder %s26, 3
      %p382 = pnand %p380, %p381
      %p383 = pneg %p382
      // Predicated region
      $region9: #{tpu_custom_call.1} parent=5 // pred_check
        _
      $region10: #{tpu_custom_call.1} parent=5 // pred_check_branch
        %385 = sbr.rel (%p382) target = $region12
      $region11: #{tpu_custom_call.1} parent=5 // pred_region
        %s386 = ssub.s32 %s26, 1
        // Predicated region
        $region13: #{tpu_custom_call.1} parent=11 // pred_check
          %p387 = pneg %p73
        $region14: #{tpu_custom_call.1} parent=11 // pred_check_branch
          %389 = sbr.rel (%p387) target = $region16
        $region15: #{tpu_custom_call.1} parent=11 // pred_region
          _
        $region16: #{tpu_custom_call.1} parent=11 // pred_fallthru
          _
        // Predicated region
        $region17: #{tpu_custom_call.1} parent=11 // pred_check
          %p390 = pneg %p94
        $region18: #{tpu_custom_call.1} parent=11 // pred_check_branch
          %392 = sbr.rel (%p390) target = $region20
        $region19: #{tpu_custom_call.1} parent=11 // pred_region
          _
        $region20: #{tpu_custom_call.1} parent=11 // pred_fallthru
          _
        // Predicated region
        $region21: #{tpu_custom_call.1} parent=11 // pred_check
          %p393 = pneg %p115
        $region22: #{tpu_custom_call.1} parent=11 // pred_check_branch
          %395 = sbr.rel (%p393) target = $region24
        $region23: #{tpu_custom_call.1} parent=11 // pred_region
          _
        $region24: #{tpu_custom_call.1} parent=11 // pred_fallthru
          _
        // Predicated region
        $region25: #{tpu_custom_call.1} parent=11 // pred_check
          %p396 = pneg %p136
        $region26: #{tpu_custom_call.1} parent=11 // pred_check_branch
          %398 = sbr.rel (%p396) target = $region28
        $region27: #{tpu_custom_call.1} parent=11 // pred_region
          _
        $region28: #{tpu_custom_call.1} parent=11 // pred_fallthru
          _
        // Predicated region
        $region29: #{tpu_custom_call.1} parent=11 // pred_check
          %p399 = pneg %p157
        $region30: #{tpu_custom_call.1} parent=11 // pred_check_branch
          %401 = sbr.rel (%p399) target = $region32
        $region31: #{tpu_custom_call.1} parent=11 // pred_region
          _
        $region32: #{tpu_custom_call.1} parent=11 // pred_fallthru
          _
        // Predicated region
        $region33: #{tpu_custom_call.1} parent=11 // pred_check
          %p402 = pneg %p178
        $region34: #{tpu_custom_call.1} parent=11 // pred_check_branch
          %404 = sbr.rel (%p402) target = $region36
        $region35: #{tpu_custom_call.1} parent=11 // pred_region
          _
        $region36: #{tpu_custom_call.1} parent=11 // pred_fallthru
          _
        // Predicated region
        $region37: #{tpu_custom_call.1} parent=11 // pred_check
          %p405 = pneg %p199
        $region38: #{tpu_custom_call.1} parent=11 // pred_check_branch
          %407 = sbr.rel (%p405) target = $region40
        $region39: #{tpu_custom_call.1} parent=11 // pred_region
          _
        $region40: #{tpu_custom_call.1} parent=11 // pred_fallthru
          _
        // Predicated region
        $region41: #{tpu_custom_call.1} parent=11 // pred_check
          %p408 = pneg %p220
        $region42: #{tpu_custom_call.1} parent=11 // pred_check_branch
          %410 = sbr.rel (%p408) target = $region44
        $region43: #{tpu_custom_call.1} parent=11 // pred_region
          _
        $region44: #{tpu_custom_call.1} parent=11 // pred_fallthru
          _
        // Predicated region
        $region45: #{tpu_custom_call.1} parent=11 // pred_check
          %p411 = pneg %p241
        $region46: #{tpu_custom_call.1} parent=11 // pred_check_branch
          %413 = sbr.rel (%p411) target = $region48
        $region47: #{tpu_custom_call.1} parent=11 // pred_region
          _
        $region48: #{tpu_custom_call.1} parent=11 // pred_fallthru
          _
        // Predicated region
        $region49: #{tpu_custom_call.1} parent=11 // pred_check
          %p414 = pneg %p262
        $region50: #{tpu_custom_call.1} parent=11 // pred_check_branch
          %416 = sbr.rel (%p414) target = $region52
        $region51: #{tpu_custom_call.1} parent=11 // pred_region
          %418 = vsyncadd [#allocation7], 0
          %s419 = sshll.u32 %s10, 4
          %s420 = int_to_ptr.hbm [resolvable:$true] %s419
          %s421 = sshll.u32 [#allocation6], 4
          %s422 = int_to_ptr.vmem [resolvable:$true] %s421
          %427 = dma.hbm_to_vmem [thread:$0]  %s420, 512, %s422, [#allocation7], 128, 128, 8
        $region52: #{tpu_custom_call.1} parent=11 // pred_fallthru
          _
        // Predicated region
        $region53: #{tpu_custom_call.1} parent=11 // pred_check
          %p428 = pneg %p283
        $region54: #{tpu_custom_call.1} parent=11 // pred_check_branch
          %430 = sbr.rel (%p428) target = $region56
        $region55: #{tpu_custom_call.1} parent=11 // pred_region
          _
        $region56: #{tpu_custom_call.1} parent=11 // pred_fallthru
          _
        // Predicated region
        $region57: #{tpu_custom_call.1} parent=11 // pred_check
          %p431 = pneg %p304
        $region58: #{tpu_custom_call.1} parent=11 // pred_check_branch
          %433 = sbr.rel (%p431) target = $region60
        $region59: #{tpu_custom_call.1} parent=11 // pred_region
          _
        $region60: #{tpu_custom_call.1} parent=11 // pred_fallthru
          _
        // Predicated region
        $region61: #{tpu_custom_call.1} parent=11 // pred_check
          %p434 = pneg %p325
        $region62: #{tpu_custom_call.1} parent=11 // pred_check_branch
          %436 = sbr.rel (%p434) target = $region64
        $region63: #{tpu_custom_call.1} parent=11 // pred_region
          %438 = vsyncadd [#allocation10], 0
          %s439 = sshll.u32 %s13, 4
          %s440 = int_to_ptr.hbm [resolvable:$true] %s439
          %s441 = sshll.u32 [#allocation9], 4
          %s442 = int_to_ptr.vmem [resolvable:$true] %s441
          %447 = dma.hbm_to_vmem [thread:$0]  %s440, 512, %s442, [#allocation10], 128, 128, 8
        $region64: #{tpu_custom_call.1} parent=11 // pred_fallthru
          _
        // Predicated region
        $region65: #{tpu_custom_call.1} parent=11 // pred_check
          %p448 = pneg %p346
        $region66: #{tpu_custom_call.1} parent=11 // pred_check_branch
          %450 = sbr.rel (%p448) target = $region68
        $region67: #{tpu_custom_call.1} parent=11 // pred_region
          _
        $region68: #{tpu_custom_call.1} parent=11 // pred_fallthru
          _
      $region12: #{tpu_custom_call.1} parent=5 // pred_fallthru
        _
      %p451 = scmp.lt.s32.totalorder %s26, 2
      // Predicated region
      $region69: #{tpu_custom_call.1} parent=5 // pred_check
        %p452 = pneg %p451
      $region70: #{tpu_custom_call.1} parent=5 // pred_check_branch
        %454 = sbr.rel (%p452) target = $region72
      $region71: #{tpu_custom_call.1} parent=5 // pred_region
        // Predicated region
        $region73: #{tpu_custom_call.1} parent=71 // pred_check
          %p455 = pneg %p46
        $region74: #{tpu_custom_call.1} parent=71 // pred_check_branch
          %457 = sbr.rel (%p455) target = $region76
        $region75: #{tpu_custom_call.1} parent=71 // pred_region
          %p458 = scmp.lt.s32.totalorder %s26, 1
          %s459 = scalar_select %p458, %s26, 1
          %s460 = smul.addr %s459, 2
          %s461 = smul.addr %s460, 8
          %s462 = scalar_lea.vmem %s0, %s461
        $region76: #{tpu_custom_call.1} parent=71 // pred_fallthru
          _
      $region72: #{tpu_custom_call.1} parent=5 // pred_fallthru
        _
      %p463 = scmp.le.s32.totalorder 1, %s26
      %p464 = scmp.lt.s32.totalorder %s26, 3
      %p465 = pnand %p463, %p464
      %p466 = pneg %p465
      // Predicated region
      $region77: #{tpu_custom_call.1} parent=5 // pred_check
        _
      $region78: #{tpu_custom_call.1} parent=5 // pred_check_branch
        %468 = sbr.rel (%p465) target = $region80
      $region79: #{tpu_custom_call.1} parent=5 // pred_region
        %s469 = ssub.s32 %s26, 1
        // Predicated region
        $region81: #{tpu_custom_call.1} parent=79 // pred_check
          %p470 = pneg %p262
        $region82: #{tpu_custom_call.1} parent=79 // pred_check_branch
          %472 = sbr.rel (%p470) target = $region84
        $region83: #{tpu_custom_call.1} parent=79 // pred_region
          %474 = dma.done [#allocation7], 512
        $region84: #{tpu_custom_call.1} parent=79 // pred_fallthru
          _
        // Predicated region
        $region85: #{tpu_custom_call.1} parent=79 // pred_check
          %p475 = pneg %p325
        $region86: #{tpu_custom_call.1} parent=79 // pred_check_branch
          %477 = sbr.rel (%p475) target = $region88
        $region87: #{tpu_custom_call.1} parent=79 // pred_region
          %479 = dma.done [#allocation10], 512
        $region88: #{tpu_custom_call.1} parent=79 // pred_fallthru
          _
        %p480 = scmp.lt.s32.totalorder %s31, 1
        %s481 = scalar_select %p480, %s31, 1
        %s482 = smul.addr %s481, 2
        %s483 = smul.addr %s482, 8
        %s484 = scalar_lea.vmem %s0, %s483
        %p485 = pneg %p52
        %p486 = pneg %p49
        %p487 = pneg %p73
        %p488 = pneg %p70
        %p489 = pneg %p94
        %p490 = pneg %p91
        %p491 = pneg %p115
        %p492 = pneg %p112
        %p493 = pneg %p136
        %p494 = pneg %p133
        %p495 = pneg %p157
        %p496 = pneg %p154
        %p497 = pneg %p178
        %p498 = pneg %p175
        %p499 = pneg %p199
        %p500 = pneg %p196
        %p501 = pneg %p220
        %p502 = pneg %p217
        %p503 = pneg %p241
        %p504 = pneg %p238
        %p505 = pneg %p262
        %p506 = pneg %p259
        %p507 = pneg %p283
        %p508 = pneg %p280
        %p509 = pneg %p304
        %p510 = pneg %p301
        %p511 = pneg %p325
        %p512 = pneg %p322
        %p513 = pneg %p346
        %p514 = pneg %p343
        %p515 = pneg %p372
        %p516 = pneg %p369
        %s517 = sand.u32 %s359, 1
        %s518 = scalar_lea.sflag [#allocation8], %s517
        %s519 = sand.u32 %s359, 1
        %s520 = scalar_lea.vmem [#allocation11], %s519
        %p521 = scmp.lt.s32.totalorder %s31, 1
        %s522 = scalar_select %p521, %s31, 1
        %s523 = smul.addr %s522, 2
        %s524 = smul.addr %s523, 8
        %s525 = scalar_lea.vmem %s0, %s524
        %v526 = vld [vmem:[%s525] sm:$0xff]
        %v527 = vld [vmem:[%s525 + $0x8] sm:$0xff]
        %v528 = vlaneseq
        %v529 = vshrl.u32 %v528, 7
        %v530 = vadd.s32 %v529, 8
        %vm531 = vcmp.lt.s32.totalorder %v529, 0
        %v532 = vsub.s32 0, %v529
        %v533 = vsel %vm531, %v532, %v529
        %v534 = vshrl.u32 %v533, 4
        %v535 = vand.u32 %v533, 15
        %v536 = vsub.s32 0, %v535
        %v537 = vsel %vm531, %v536, %v535
        %vm538 = vcmp.lt.s32.totalorder %v530, 0
        %v539 = vsub.s32 0, %v530
        %v540 = vsel %vm538, %v539, %v530
        %v541 = vshrl.u32 %v540, 4
        %v542 = vand.u32 %v540, 15
        %v543 = vsub.s32 0, %v542
        %v544 = vsel %vm538, %v543, %v542
        %vm545 = vcmp.ne.s32.totalorder %v537, 0
        %vm546 = vcmp.ne.s32.totalorder %v544, 0
        %vm547 = vcmp.lt.s32.totalorder %v537, 0
        %vm548 = vcmp.lt.s32.totalorder %v544, 0
        %vm549 = vmand %vm547, %vm545
        %vm550 = vmand %vm548, %vm546
        %v551 = vadd.s32 %v537, 16
        %v552 = vadd.s32 %v544, 16
        %v553 = vsel %vm549, %v551, %v537
        %v554 = vsel %vm550, %v552, %v544
        %vm555 = vcmp.eq.s32.totalorder %v553, 0
        %vm556 = vcmp.eq.s32.totalorder %v554, 0
        %v557 = vrot.slane %v526, 7
        %v558 = vrot.slane %v527, 7
        %vm559 = vcmp.lt.s32.totalorder %v529, 1
        %v560 = vsel %vm559, %v557, %v558
        %v561 = vsel %vm559, %v558, %v557
        %v562 = vsel %vm555, 1, 0
        %v563 = vsel %vm556, 1, 0
        %vm564 = vcmp.eq.s32.totalorder %v562, 1
        %vm565 = vcmp.eq.s32.totalorder %v563, 1
        %v566 = vsel %vm564, 0.0, %v561
        %v567 = vsel %vm565, 0.0, %v560
        %vm568 = vcmp.eq.s32.totalorder %v553, 15
        %vm569 = vcmp.eq.s32.totalorder %v554, 15
        %v570 = vrot.slane %v526, 1
        %v571 = vrot.slane %v527, 1
        %vm572 = vcmp.lt.s32.totalorder %v529, 7
        %v573 = vsel %vm572, %v570, %v571
        %v574 = vsel %vm572, %v571, %v570
        %v575 = vsel %vm568, 1, 0
        %v576 = vsel %vm569, 1, 0
        %vm577 = vcmp.eq.s32.totalorder %v575, 1
        %vm578 = vcmp.eq.s32.totalorder %v576, 1
        %v579 = vsel %vm577, 0.0, %v573
        %v580 = vsel %vm578, 0.0, %v574
        %583 = vrot.lane.b32.xlu0 %v526, 4
        %v584 = vpop.permute.xlu0 %583
        %585 = vrot.lane.b32.xlu0 %v527, 4
        %v586 = vpop.permute.xlu0 %585
        %591 = vrot.lane.b32.xlu0 %v579, 8
        %v592 = vpop.permute.xlu0 %591
        %593 = vrot.lane.b32.xlu0 %v580, 8
        %v594 = vpop.permute.xlu0 %593
        %vm597 = vcmask 31744
        %v598 = vsel %vm597, %v566, %v584
        %v599 = vsel %vm597, %v567, %v586
        %vm600 = vcmask 64512
        %v601 = vsel %vm600, %v598, %v592
        %v602 = vsel %vm600, %v599, %v594
        %v603 = vld [vmem:[%s1] sm:$0xff]
        %v604 = vld [vmem:[%s1 + $0x8] sm:$0xf]
        %v605 = vld [vmem:[%s2] sm:$0x1]
        %v607 = vperm.slane %v605, 0
        %vm609 = vcmask 97280
        %v611 = vsel %vm609, %v601, 0
        %v614 = vsel %vm609, %v602, 0
        %vm616 = vcmask 1043456
        %v618 = vsel %vm616, %v604, 0
        %620 = vmatpush.msra.mxu0 0.0
        %621 = vmatpush.msra.mxu0 0.0
        %622 = vmatpush.msra.mxu0 0.0
        %623 = vmatpush.msra.mxu0 0.0
        %624 = vmatpush.msra.mxu0 0.0
        %625 = vmatpush.msra.mxu0 0.0
        %626 = vmatpush.msra.mxu0 0.0
        %627 = vmatpush.msra.mxu0 0.0
        %628 = vmatpush.msra.mxu0 0.0
        %629 = vmatpush.msra.mxu0 0.0
        %630 = vmatpush.msra.mxu0 0.0
        %631 = vmatpush.msra.mxu0 0.0
        %632 = vmatpush.msra.mxu0 0.0
        %633 = vmatpush.msra.mxu0 0.0
        %634 = vmatpush.msra.mxu0 %v618
        %635 = vmatpush.msra.mxu0 %v603
        %636 = vmatmul.f32.gmra.mxu0 %v611
        %v637 = vpop.f32.mrf.mxu0
        %v638 = vadd.f32 %v607, %v637
        %639 = vmatmul.f32.gmra.mxu0 %v614
        %v640 = vpop.f32.mrf.mxu0
        %v641 = vadd.f32 %v607, %v640
        %642 = vdwg.mxu0
        %v643 = vmax.f32 %v638, 0.0
        %v644 = vmax.f32 %v641, 0.0
        %v645 = vrot.slane %v643, 1
        %v646 = vrot.slane %v644, 1
        %v647 = vsel %vm572, %v645, %v646
        %v648 = vsel %vm572, %v646, %v645
        %v649 = vmax.f32 %v643, %v647
        %v650 = vmax.f32 %v644, %v648
        %651 = vst.msk [vmem:[#allocation2] sm:$0xff] %vm600, %v649
        %652 = vst.msk [vmem:[#allocation2 + $0x8] sm:$0xff] %vm600, %v650
        %v653 = vld [vmem:[#allocation2] ss:$2 sm:$0xff]
        %vm654 = vcmp.lt.s32.totalorder %v529, 0
        %v655 = vsub.s32 0, %v529
        %v656 = vsel %vm654, %v655, %v529
        %v657 = vshrl.u32 %v656, 3
        %v658 = vand.u32 %v656, 7
        %v659 = vsub.s32 0, %v658
        %v660 = vsel %vm654, %v659, %v658
        %vm661 = vcmp.ne.s32.totalorder %v660, 0
        %vm662 = vcmp.lt.s32.totalorder %v660, 0
        %vm663 = vmand %vm662, %vm661
        %v664 = vadd.s32 %v660, 8
        %v665 = vsel %vm663, %v664, %v660
        %vm666 = vcmp.eq.s32.totalorder %v665, 0
        %v667 = vrot.slane %v653, 7
        %v668 = vsel %vm666, 1, 0
        %vm669 = vcmp.eq.s32.totalorder %v668, 1
        %v670 = vsel %vm669, 0.0, %v667
        %vm671 = vcmp.eq.s32.totalorder %v665, 7
        %v672 = vrot.slane %v653, 1
        %v673 = vsel %vm671, 1, 0
        %vm674 = vcmp.eq.s32.totalorder %v673, 1
        %v675 = vsel %vm674, 0.0, %v672
        %677 = vrot.lane.b32.xlu0 %v653, 8
        %v678 = vpop.permute.xlu0 %677
        %681 = vrot.lane.b32.xlu0 %v675, 16
        %v682 = vpop.permute.xlu0 %681
        %v684 = vsel %vm600, %v670, %v678
        %vm685 = vcmask 130048
        %v686 = vsel %vm685, %v684, %v682
        %v687 = vld [vmem:[%s3] sm:$0xff]
        %v688 = vld [vmem:[%s3 + $0x8] sm:$0xff]
        %v689 = vld [vmem:[%s3 + $0x10] sm:$0xff]
        %v690 = vld [vmem:[%s4] sm:$0x1]
        %v692 = vperm.slane %v690, 0
        %vm694 = vcmask 195584
        %v696 = vsel %vm694, %v686, 0
        %698 = vmatpush.msra.mxu0 0.0
        %699 = vmatpush.msra.mxu0 0.0
        %700 = vmatpush.msra.mxu0 0.0
        %701 = vmatpush.msra.mxu0 0.0
        %702 = vmatpush.msra.mxu0 0.0
        %703 = vmatpush.msra.mxu0 0.0
        %704 = vmatpush.msra.mxu0 0.0
        %705 = vmatpush.msra.mxu0 0.0
        %706 = vmatpush.msra.mxu0 0.0
        %707 = vmatpush.msra.mxu0 0.0
        %708 = vmatpush.msra.mxu0 0.0
        %709 = vmatpush.msra.mxu0 0.0
        %710 = vmatpush.msra.mxu0 0.0
        %711 = vmatpush.msra.mxu0 %v689
        %712 = vmatpush.msra.mxu0 %v688
        %713 = vmatpush.msra.mxu0 %v687
        %714 = vmatmul.f32.gmra.mxu0 %v696
        %v715 = vpop.f32.mrf.mxu0
        %v716 = vadd.f32 %v692, %v715
        %717 = vdwg.mxu0
        %v718 = vmax.f32 %v716, 0.0
        %v719 = vrot.slane %v718, 1
        %v720 = vmax.f32 %v718, %v719
        %721 = vst.msk [vmem:[#allocation3] sm:$0xff] %vm685, %v720
        %v722 = vld [vmem:[#allocation3] ss:$2 sm:$0xf]
        %v723 = vld [vmem:[%s5] sm:$0xff]
        %v724 = vld [vmem:[%s5 + $0x8] sm:$0xff]
        %v725 = vld [vmem:[%s7] sm:$0x1]
        %v727 = vperm.slane %v725, 0
        %v730 = vsel %vm685, %v722, 0
        %732 = vmatpush.msra.mxu0 0.0
        %733 = vmatpush.msra.mxu0 0.0
        %734 = vmatpush.msra.mxu0 0.0
        %735 = vmatpush.msra.mxu0 0.0
        %736 = vmatpush.msra.mxu0 0.0
        %737 = vmatpush.msra.mxu0 0.0
        %738 = vmatpush.msra.mxu0 0.0
        %739 = vmatpush.msra.mxu0 0.0
        %740 = vmatpush.msra.mxu0 0.0
        %741 = vmatpush.msra.mxu0 0.0
        %742 = vmatpush.msra.mxu0 0.0
        %743 = vmatpush.msra.mxu0 0.0
        %744 = vmatpush.msra.mxu0 0.0
        %745 = vmatpush.msra.mxu0 0.0
        %746 = vmatpush.msra.mxu0 %v724
        %747 = vmatpush.msra.mxu0 %v723
        %748 = vmatmul.f32.gmra.mxu0 %v730
        %v749 = vpop.f32.mrf.mxu0
        %v750 = vadd.f32 %v727, %v749
        %751 = vdwg.mxu0
        %vm752 = vcmask 781312
        %753 = vst.msk [vmem:[#allocation4] sm:$0xf] %vm752, %v750
        %v754 = vld [vmem:[%s8] sm:$0x1]
        %v755 = vld [vmem:[#allocation4] sm:$0x1]
        %v756 = vld [vmem:[%s6] sm:$0xff]
        %v757 = vld [vmem:[%s6 + $0x8] sm:$0xff]
        %v758 = vld [vmem:[%s6 + $0x10] sm:$0xff]
        %v759 = vld [vmem:[%s6 + $0x18] sm:$0xff]
        %vm760 = vcmask 261120
        %v762 = vsel %vm760, 0.0, 0
        %764 = vmatpush.msra.mxu0 0.0
        %765 = vmatpush.msra.mxu0 0.0
        %766 = vmatpush.msra.mxu0 0.0
        %767 = vmatpush.msra.mxu0 0.0
        %768 = vmatpush.msra.mxu0 0.0
        %769 = vmatpush.msra.mxu0 0.0
        %770 = vmatpush.msra.mxu0 0.0
        %771 = vmatpush.msra.mxu0 0.0
        %772 = vmatpush.msra.mxu0 0.0
        %773 = vmatpush.msra.mxu0 0.0
        %774 = vmatpush.msra.mxu0 0.0
        %775 = vmatpush.msra.mxu0 0.0
        %776 = vmatpush.msra.mxu0 %v759
        %777 = vmatpush.msra.mxu0 %v758
        %778 = vmatpush.msra.mxu0 %v757
        %779 = vmatpush.msra.mxu0 %v756
        %780 = vmatmul.f32.gmra.mxu0 %v762
        %v781 = vpop.f32.mrf.mxu0
        %v782 = vadd.f32 0.0, %v781
        %783 = vdwg.mxu0
        %v784 = vadd.f32 %v755, %v782
        %v785 = vxor.u32 %v784, 2147483648
        %v786 = vmul.f32 %v785, 1.442695
        %v787 = vpow.pop %v786
        %v788 = vadd.f32 %v787, 1.0
        %v789 = vrcp.pop %v788
        %v790 = vmul.f32 %v788, %v789
        %v791 = vsub.f32 1.0, %v790
        %v792 = vmul.f32 %v789, %v791
        %v793 = vadd.f32 %v789, %v792
        %vm794 = vweird.f32 %v788
        %vm795 = vweird.f32 %v789
        %vm796 = vmor %vm794, %vm795
        %v797 = vsel %vm796, %v789, %v793
        %v798 = vand.u32 2147483647, %v788
        %vm799 = vcmp.eq.f32.partialorder %v798, 8.507059e+37
        %v800 = vand.u32 %v788, 2147483648
        %v801 = vor.u32 1.1754944e-38, %v800
        %v802 = vsel %vm799, %v801, %v797
        %v803 = vmul.f32 1.0, %v802
        %v805 = vperm.slane %v754, 0
        %806 = vrot.lane.b32.xlu0 %v805, 64
        %v807 = vpop.permute.xlu0 %806
        %v809 = vadd.f32 %v782, %v807
        %811 = vrot.lane.b32.xlu0 %v809, 64
        %v812 = vpop.permute.xlu0 %811
        %v814 = vmul.f32 %v803, %v812
        %816 = vrot.lane.b32.xlu0 %v814, 64
        %v817 = vpop.permute.xlu0 %816
        %v819 = vadd.f32 %v755, %v817
        %v820 = vtanh.pop %v819
        %v821 = vsub.f32 1.0, %v803
        %823 = vrot.lane.b32.xlu0 %v820, 96
        %v824 = vpop.permute.xlu0 %823
        %v826 = vmul.f32 %v821, %v824
        %v827 = vmul.f32 %v803, 0.0
        %v828 = vadd.f32 %v826, %v827
        %830 = vrot.lane.b32.xlu0 %v828, 96
        %v831 = vpop.permute.xlu0 %830
        %vm833 = vcmask 253952
        %834 = vst.msk [vmem:[#allocation5] sm:$0x1] %vm833, %v831
        %v835 = vld [vmem:[#allocation4 + $0x1] sm:$0x1]
        %v836 = vld [vmem:[%s6] sm:$0xff]
        %v837 = vld [vmem:[%s6 + $0x8] sm:$0xff]
        %v838 = vld [vmem:[%s6 + $0x10] sm:$0xff]
        %v839 = vld [vmem:[%s6 + $0x18] sm:$0xff]
        %v840 = vsel %vm760, %v831, 0
        %842 = vmatpush.msra.mxu0 0.0
        %843 = vmatpush.msra.mxu0 0.0
        %844 = vmatpush.msra.mxu0 0.0
        %845 = vmatpush.msra.mxu0 0.0
        %846 = vmatpush.msra.mxu0 0.0
        %847 = vmatpush.msra.mxu0 0.0
        %848 = vmatpush.msra.mxu0 0.0
        %849 = vmatpush.msra.mxu0 0.0
        %850 = vmatpush.msra.mxu0 0.0
        %851 = vmatpush.msra.mxu0 0.0
        %852 = vmatpush.msra.mxu0 0.0
        %853 = vmatpush.msra.mxu0 0.0
        %854 = vmatpush.msra.mxu0 %v839
        %855 = vmatpush.msra.mxu0 %v838
        %856 = vmatpush.msra.mxu0 %v837
        %857 = vmatpush.msra.mxu0 %v836
        %858 = vmatmul.f32.gmra.mxu0 %v840
        %v859 = vpop.f32.mrf.mxu0
        %v860 = vadd.f32 0.0, %v859
        %861 = vdwg.mxu0
        %v862 = vadd.f32 %v835, %v860
        %v863 = vxor.u32 %v862, 2147483648
        %v864 = vmul.f32 %v863, 1.442695
        %v865 = vpow.pop %v864
        %v866 = vadd.f32 %v865, 1.0
        %v867 = vrcp.pop %v866
        %v868 = vmul.f32 %v866, %v867
        %v869 = vsub.f32 1.0, %v868
        %v870 = vmul.f32 %v867, %v869
        %v871 = vadd.f32 %v867, %v870
        %vm872 = vweird.f32 %v866
        %vm873 = vweird.f32 %v867
        %vm874 = vmor %vm872, %vm873
        %v875 = vsel %vm874, %v867, %v871
        %v876 = vand.u32 2147483647, %v866
        %vm877 = vcmp.eq.f32.partialorder %v876, 8.507059e+37
        %v878 = vand.u32 %v866, 2147483648
        %v879 = vor.u32 1.1754944e-38, %v878
        %v880 = vsel %vm877, %v879, %v875
        %v881 = vmul.f32 1.0, %v880
        %v882 = vadd.f32 %v860, %v807
        %884 = vrot.lane.b32.xlu0 %v882, 64
        %v885 = vpop.permute.xlu0 %884
        %v887 = vmul.f32 %v881, %v885
        %889 = vrot.lane.b32.xlu0 %v887, 64
        %v890 = vpop.permute.xlu0 %889
        %v892 = vadd.f32 %v835, %v890
        %v893 = vtanh.pop %v892
        %v894 = vsub.f32 1.0, %v881
        %896 = vrot.lane.b32.xlu0 %v893, 96
        %v897 = vpop.permute.xlu0 %896
        %v899 = vmul.f32 %v894, %v897
        %v900 = vmul.f32 %v881, %v828
        %v901 = vadd.f32 %v899, %v900
        %903 = vrot.lane.b32.xlu0 %v901, 96
        %v904 = vpop.permute.xlu0 %903
        %906 = vst.msk [vmem:[#allocation5 + $0x1] sm:$0x1] %vm833, %v904
        %v907 = vld [vmem:[#allocation4 + $0x2] sm:$0x1]
        %v908 = vld [vmem:[%s6] sm:$0xff]
        %v909 = vld [vmem:[%s6 + $0x8] sm:$0xff]
        %v910 = vld [vmem:[%s6 + $0x10] sm:$0xff]
        %v911 = vld [vmem:[%s6 + $0x18] sm:$0xff]
        %v912 = vsel %vm760, %v904, 0
        %914 = vmatpush.msra.mxu0 0.0
        %915 = vmatpush.msra.mxu0 0.0
        %916 = vmatpush.msra.mxu0 0.0
        %917 = vmatpush.msra.mxu0 0.0
        %918 = vmatpush.msra.mxu0 0.0
        %919 = vmatpush.msra.mxu0 0.0
        %920 = vmatpush.msra.mxu0 0.0
        %921 = vmatpush.msra.mxu0 0.0
        %922 = vmatpush.msra.mxu0 0.0
        %923 = vmatpush.msra.mxu0 0.0
        %924 = vmatpush.msra.mxu0 0.0
        %925 = vmatpush.msra.mxu0 0.0
        %926 = vmatpush.msra.mxu0 %v911
        %927 = vmatpush.msra.mxu0 %v910
        %928 = vmatpush.msra.mxu0 %v909
        %929 = vmatpush.msra.mxu0 %v908
        %930 = vmatmul.f32.gmra.mxu0 %v912
        %v931 = vpop.f32.mrf.mxu0
        %v932 = vadd.f32 0.0, %v931
        %933 = vdwg.mxu0
        %v934 = vadd.f32 %v907, %v932
        %v935 = vxor.u32 %v934, 2147483648
        %v936 = vmul.f32 %v935, 1.442695
        %v937 = vpow.pop %v936
        %v938 = vadd.f32 %v937, 1.0
        %v939 = vrcp.pop %v938
        %v940 = vmul.f32 %v938, %v939
        %v941 = vsub.f32 1.0, %v940
        %v942 = vmul.f32 %v939, %v941
        %v943 = vadd.f32 %v939, %v942
        %vm944 = vweird.f32 %v938
        %vm945 = vweird.f32 %v939
        %vm946 = vmor %vm944, %vm945
        %v947 = vsel %vm946, %v939, %v943
        %v948 = vand.u32 2147483647, %v938
        %vm949 = vcmp.eq.f32.partialorder %v948, 8.507059e+37
        %v950 = vand.u32 %v938, 2147483648
        %v951 = vor.u32 1.1754944e-38, %v950
        %v952 = vsel %vm949, %v951, %v947
        %v953 = vmul.f32 1.0, %v952
        %v954 = vadd.f32 %v932, %v807
        %956 = vrot.lane.b32.xlu0 %v954, 64
        %v957 = vpop.permute.xlu0 %956
        %v959 = vmul.f32 %v953, %v957
        %961 = vrot.lane.b32.xlu0 %v959, 64
        %v962 = vpop.permute.xlu0 %961
        %v964 = vadd.f32 %v907, %v962
        %v965 = vtanh.pop %v964
        %v966 = vsub.f32 1.0, %v953
        %968 = vrot.lane.b32.xlu0 %v965, 96
        %v969 = vpop.permute.xlu0 %968
        %v971 = vmul.f32 %v966, %v969
        %v972 = vmul.f32 %v953, %v901
        %v973 = vadd.f32 %v971, %v972
        %975 = vrot.lane.b32.xlu0 %v973, 96
        %v976 = vpop.permute.xlu0 %975
        %978 = vst.msk [vmem:[#allocation5 + $0x2] sm:$0x1] %vm833, %v976
        %v979 = vld [vmem:[#allocation4 + $0x3] sm:$0x1]
        %v980 = vld [vmem:[%s6] sm:$0xff]
        %v981 = vld [vmem:[%s6 + $0x8] sm:$0xff]
        %v982 = vld [vmem:[%s6 + $0x10] sm:$0xff]
        %v983 = vld [vmem:[%s6 + $0x18] sm:$0xff]
        %v984 = vsel %vm760, %v976, 0
        %986 = vmatpush.msra.mxu0 0.0
        %987 = vmatpush.msra.mxu0 0.0
        %988 = vmatpush.msra.mxu0 0.0
        %989 = vmatpush.msra.mxu0 0.0
        %990 = vmatpush.msra.mxu0 0.0
        %991 = vmatpush.msra.mxu0 0.0
        %992 = vmatpush.msra.mxu0 0.0
        %993 = vmatpush.msra.mxu0 0.0
        %994 = vmatpush.msra.mxu0 0.0
        %995 = vmatpush.msra.mxu0 0.0
        %996 = vmatpush.msra.mxu0 0.0
        %997 = vmatpush.msra.mxu0 0.0
        %998 = vmatpush.msra.mxu0 %v983
        %999 = vmatpush.msra.mxu0 %v982
        %1000 = vmatpush.msra.mxu0 %v981
        %1001 = vmatpush.msra.mxu0 %v980
        %1002 = vmatmul.f32.gmra.mxu0 %v984
        %v1003 = vpop.f32.mrf.mxu0
        %v1004 = vadd.f32 0.0, %v1003
        %1005 = vdwg.mxu0
        %v1006 = vadd.f32 %v979, %v1004
        %v1007 = vxor.u32 %v1006, 2147483648
        %v1008 = vmul.f32 %v1007, 1.442695
        %v1009 = vpow.pop %v1008
        %v1010 = vadd.f32 %v1009, 1.0
        %v1011 = vrcp.pop %v1010
        %v1012 = vmul.f32 %v1010, %v1011
        %v1013 = vsub.f32 1.0, %v1012
        %v1014 = vmul.f32 %v1011, %v1013
        %v1015 = vadd.f32 %v1011, %v1014
        %vm1016 = vweird.f32 %v1010
        %vm1017 = vweird.f32 %v1011
        %vm1018 = vmor %vm1016, %vm1017
        %v1019 = vsel %vm1018, %v1011, %v1015
        %v1020 = vand.u32 2147483647, %v1010
        %vm1021 = vcmp.eq.f32.partialorder %v1020, 8.507059e+37
        %v1022 = vand.u32 %v1010, 2147483648
        %v1023 = vor.u32 1.1754944e-38, %v1022
        %v1024 = vsel %vm1021, %v1023, %v1019
        %v1025 = vmul.f32 1.0, %v1024
        %v1026 = vadd.f32 %v1004, %v807
        %1028 = vrot.lane.b32.xlu0 %v1026, 64
        %v1029 = vpop.permute.xlu0 %1028
        %v1031 = vmul.f32 %v1025, %v1029
        %1033 = vrot.lane.b32.xlu0 %v1031, 64
        %v1034 = vpop.permute.xlu0 %1033
        %v1036 = vadd.f32 %v979, %v1034
        %v1037 = vtanh.pop %v1036
        %v1038 = vsub.f32 1.0, %v1025
        %1040 = vrot.lane.b32.xlu0 %v1037, 96
        %v1041 = vpop.permute.xlu0 %1040
        %v1043 = vmul.f32 %v1038, %v1041
        %v1044 = vmul.f32 %v1025, %v973
        %v1045 = vadd.f32 %v1043, %v1044
        %1047 = vrot.lane.b32.xlu0 %v1045, 96
        %v1048 = vpop.permute.xlu0 %1047
        %1050 = vst.msk [vmem:[#allocation5 + $0x3] sm:$0x1] %vm833, %v1048
        %v1051 = vld [vmem:[#allocation5] sm:$0xf]
        %v1052 = vld [vmem:[%s9] sm:$0xff]
        %v1053 = vld [vmem:[%s9 + $0x8] sm:$0xff]
        %v1054 = vld [vmem:[%s9 + $0x10] sm:$0xff]
        %v1055 = vld [vmem:[%s9 + $0x18] sm:$0xff]
        %v1056 = vld [vmem:[%s11] sm:$0x1]
        %v1058 = vperm.slane %v1056, 0
        %v1061 = vsel %vm760, %v1051, 0
        %1063 = vmatpush.msra.mxu0 0.0
        %1064 = vmatpush.msra.mxu0 0.0
        %1065 = vmatpush.msra.mxu0 0.0
        %1066 = vmatpush.msra.mxu0 0.0
        %1067 = vmatpush.msra.mxu0 0.0
        %1068 = vmatpush.msra.mxu0 0.0
        %1069 = vmatpush.msra.mxu0 0.0
        %1070 = vmatpush.msra.mxu0 0.0
        %1071 = vmatpush.msra.mxu0 0.0
        %1072 = vmatpush.msra.mxu0 0.0
        %1073 = vmatpush.msra.mxu0 0.0
        %1074 = vmatpush.msra.mxu0 0.0
        %1075 = vmatpush.msra.mxu0 %v1055
        %1076 = vmatpush.msra.mxu0 %v1054
        %1077 = vmatpush.msra.mxu0 %v1053
        %1078 = vmatpush.msra.mxu0 %v1052
        %1079 = vmatmul.f32.gmra.mxu0 %v1061
        %v1080 = vpop.f32.mrf.mxu0
        %v1081 = vadd.f32 %v1058, %v1080
        %1082 = vdwg.mxu0
        %1083 = vst.msk [vmem:[#allocation4] sm:$0xf] %vm752, %v1081
        %v1084 = vld [vmem:[%s12] sm:$0x1]
        %v1085 = vld [vmem:[#allocation4] sm:$0x1]
        %v1086 = vld [vmem:[#allocation6] sm:$0xff]
        %v1087 = vld [vmem:[#allocation6 + $0x8] sm:$0xff]
        %v1088 = vld [vmem:[#allocation6 + $0x10] sm:$0xff]
        %v1089 = vld [vmem:[#allocation6 + $0x18] sm:$0xff]
        %1090 = vmatpush.msra.mxu0 0.0
        %1091 = vmatpush.msra.mxu0 0.0
        %1092 = vmatpush.msra.mxu0 0.0
        %1093 = vmatpush.msra.mxu0 0.0
        %1094 = vmatpush.msra.mxu0 0.0
        %1095 = vmatpush.msra.mxu0 0.0
        %1096 = vmatpush.msra.mxu0 0.0
        %1097 = vmatpush.msra.mxu0 0.0
        %1098 = vmatpush.msra.mxu0 0.0
        %1099 = vmatpush.msra.mxu0 0.0
        %1100 = vmatpush.msra.mxu0 0.0
        %1101 = vmatpush.msra.mxu0 0.0
        %1102 = vmatpush.msra.mxu0 %v1089
        %1103 = vmatpush.msra.mxu0 %v1088
        %1104 = vmatpush.msra.mxu0 %v1087
        %1105 = vmatpush.msra.mxu0 %v1086
        %1106 = vmatmul.f32.gmra.mxu0 %v762
        %v1107 = vpop.f32.mrf.mxu0
        %v1108 = vadd.f32 0.0, %v1107
        %1109 = vdwg.mxu0
        %v1110 = vadd.f32 %v1085, %v1108
        %v1111 = vxor.u32 %v1110, 2147483648
        %v1112 = vmul.f32 %v1111, 1.442695
        %v1113 = vpow.pop %v1112
        %v1114 = vadd.f32 %v1113, 1.0
        %v1115 = vrcp.pop %v1114
        %v1116 = vmul.f32 %v1114, %v1115
        %v1117 = vsub.f32 1.0, %v1116
        %v1118 = vmul.f32 %v1115, %v1117
        %v1119 = vadd.f32 %v1115, %v1118
        %vm1120 = vweird.f32 %v1114
        %vm1121 = vweird.f32 %v1115
        %vm1122 = vmor %vm1120, %vm1121
        %v1123 = vsel %vm1122, %v1115, %v1119
        %v1124 = vand.u32 2147483647, %v1114
        %vm1125 = vcmp.eq.f32.partialorder %v1124, 8.507059e+37
        %v1126 = vand.u32 %v1114, 2147483648
        %v1127 = vor.u32 1.1754944e-38, %v1126
        %v1128 = vsel %vm1125, %v1127, %v1123
        %v1129 = vmul.f32 1.0, %v1128
        %v1131 = vperm.slane %v1084, 0
        %1132 = vrot.lane.b32.xlu0 %v1131, 64
        %v1133 = vpop.permute.xlu0 %1132
        %v1135 = vadd.f32 %v1108, %v1133
        %1137 = vrot.lane.b32.xlu0 %v1135, 64
        %v1138 = vpop.permute.xlu0 %1137
        %v1140 = vmul.f32 %v1129, %v1138
        %1142 = vrot.lane.b32.xlu0 %v1140, 64
        %v1143 = vpop.permute.xlu0 %1142
        %v1145 = vadd.f32 %v1085, %v1143
        %v1146 = vtanh.pop %v1145
        %v1147 = vsub.f32 1.0, %v1129
        %1149 = vrot.lane.b32.xlu0 %v1146, 96
        %v1150 = vpop.permute.xlu0 %1149
        %v1152 = vmul.f32 %v1147, %v1150
        %v1153 = vmul.f32 %v1129, 0.0
        %v1154 = vadd.f32 %v1152, %v1153
        %v1155 = vld [vmem:[#allocation4 + $0x1] sm:$0x1]
        %1157 = vrot.lane.b32.xlu0 %v1154, 96
        %v1158 = vpop.permute.xlu0 %1157
        %v1159 = vsel %vm760, %v1158, 0
        %1161 = vmatpush.msra.mxu0 0.0
        %1162 = vmatpush.msra.mxu0 0.0
        %1163 = vmatpush.msra.mxu0 0.0
        %1164 = vmatpush.msra.mxu0 0.0
        %1165 = vmatpush.msra.mxu0 0.0
        %1166 = vmatpush.msra.mxu0 0.0
        %1167 = vmatpush.msra.mxu0 0.0
        %1168 = vmatpush.msra.mxu0 0.0
        %1169 = vmatpush.msra.mxu0 0.0
        %1170 = vmatpush.msra.mxu0 0.0
        %1171 = vmatpush.msra.mxu0 0.0
        %1172 = vmatpush.msra.mxu0 0.0
        %1173 = vmatpush.msra.mxu0 %v1089
        %1174 = vmatpush.msra.mxu0 %v1088
        %1175 = vmatpush.msra.mxu0 %v1087
        %1176 = vmatpush.msra.mxu0 %v1086
        %1177 = vmatmul.f32.gmra.mxu0 %v1159
        %v1178 = vpop.f32.mrf.mxu0
        %v1179 = vadd.f32 0.0, %v1178
        %1180 = vdwg.mxu0
        %v1181 = vadd.f32 %v1155, %v1179
        %v1182 = vxor.u32 %v1181, 2147483648
        %v1183 = vmul.f32 %v1182, 1.442695
        %v1184 = vpow.pop %v1183
        %v1185 = vadd.f32 %v1184, 1.0
        %v1186 = vrcp.pop %v1185
        %v1187 = vmul.f32 %v1185, %v1186
        %v1188 = vsub.f32 1.0, %v1187
        %v1189 = vmul.f32 %v1186, %v1188
        %v1190 = vadd.f32 %v1186, %v1189
        %vm1191 = vweird.f32 %v1185
        %vm1192 = vweird.f32 %v1186
        %vm1193 = vmor %vm1191, %vm1192
        %v1194 = vsel %vm1193, %v1186, %v1190
        %v1195 = vand.u32 2147483647, %v1185
        %vm1196 = vcmp.eq.f32.partialorder %v1195, 8.507059e+37
        %v1197 = vand.u32 %v1185, 2147483648
        %v1198 = vor.u32 1.1754944e-38, %v1197
        %v1199 = vsel %vm1196, %v1198, %v1194
        %v1200 = vmul.f32 1.0, %v1199
        %v1201 = vadd.f32 %v1179, %v1133
        %1203 = vrot.lane.b32.xlu0 %v1201, 64
        %v1204 = vpop.permute.xlu0 %1203
        %v1206 = vmul.f32 %v1200, %v1204
        %1208 = vrot.lane.b32.xlu0 %v1206, 64
        %v1209 = vpop.permute.xlu0 %1208
        %v1211 = vadd.f32 %v1155, %v1209
        %v1212 = vtanh.pop %v1211
        %v1213 = vsub.f32 1.0, %v1200
        %1215 = vrot.lane.b32.xlu0 %v1212, 96
        %v1216 = vpop.permute.xlu0 %1215
        %v1218 = vmul.f32 %v1213, %v1216
        %v1219 = vmul.f32 %v1200, %v1154
        %v1220 = vadd.f32 %v1218, %v1219
        %v1221 = vld [vmem:[#allocation4 + $0x2] sm:$0x1]
        %1223 = vrot.lane.b32.xlu0 %v1220, 96
        %v1224 = vpop.permute.xlu0 %1223
        %v1225 = vsel %vm760, %v1224, 0
        %1227 = vmatpush.msra.mxu0 0.0
        %1228 = vmatpush.msra.mxu0 0.0
        %1229 = vmatpush.msra.mxu0 0.0
        %1230 = vmatpush.msra.mxu0 0.0
        %1231 = vmatpush.msra.mxu0 0.0
        %1232 = vmatpush.msra.mxu0 0.0
        %1233 = vmatpush.msra.mxu0 0.0
        %1234 = vmatpush.msra.mxu0 0.0
        %1235 = vmatpush.msra.mxu0 0.0
        %1236 = vmatpush.msra.mxu0 0.0
        %1237 = vmatpush.msra.mxu0 0.0
        %1238 = vmatpush.msra.mxu0 0.0
        %1239 = vmatpush.msra.mxu0 %v1089
        %1240 = vmatpush.msra.mxu0 %v1088
        %1241 = vmatpush.msra.mxu0 %v1087
        %1242 = vmatpush.msra.mxu0 %v1086
        %1243 = vmatmul.f32.gmra.mxu0 %v1225
        %v1244 = vpop.f32.mrf.mxu0
        %v1245 = vadd.f32 0.0, %v1244
        %1246 = vdwg.mxu0
        %v1247 = vadd.f32 %v1221, %v1245
        %v1248 = vxor.u32 %v1247, 2147483648
        %v1249 = vmul.f32 %v1248, 1.442695
        %v1250 = vpow.pop %v1249
        %v1251 = vadd.f32 %v1250, 1.0
        %v1252 = vrcp.pop %v1251
        %v1253 = vmul.f32 %v1251, %v1252
        %v1254 = vsub.f32 1.0, %v1253
        %v1255 = vmul.f32 %v1252, %v1254
        %v1256 = vadd.f32 %v1252, %v1255
        %vm1257 = vweird.f32 %v1251
        %vm1258 = vweird.f32 %v1252
        %vm1259 = vmor %vm1257, %vm1258
        %v1260 = vsel %vm1259, %v1252, %v1256
        %v1261 = vand.u32 2147483647, %v1251
        %vm1262 = vcmp.eq.f32.partialorder %v1261, 8.507059e+37
        %v1263 = vand.u32 %v1251, 2147483648
        %v1264 = vor.u32 1.1754944e-38, %v1263
        %v1265 = vsel %vm1262, %v1264, %v1260
        %v1266 = vmul.f32 1.0, %v1265
        %v1267 = vadd.f32 %v1245, %v1133
        %1269 = vrot.lane.b32.xlu0 %v1267, 64
        %v1270 = vpop.permute.xlu0 %1269
        %v1272 = vmul.f32 %v1266, %v1270
        %1274 = vrot.lane.b32.xlu0 %v1272, 64
        %v1275 = vpop.permute.xlu0 %1274
        %v1277 = vadd.f32 %v1221, %v1275
        %v1278 = vtanh.pop %v1277
        %v1279 = vsub.f32 1.0, %v1266
        %1281 = vrot.lane.b32.xlu0 %v1278, 96
        %v1282 = vpop.permute.xlu0 %1281
        %v1284 = vmul.f32 %v1279, %v1282
        %v1285 = vmul.f32 %v1266, %v1220
        %v1286 = vadd.f32 %v1284, %v1285
        %v1287 = vld [vmem:[#allocation4 + $0x3] sm:$0x1]
        %1289 = vrot.lane.b32.xlu0 %v1286, 96
        %v1290 = vpop.permute.xlu0 %1289
        %v1291 = vsel %vm760, %v1290, 0
        %1293 = vmatpush.msra.mxu0 0.0
        %1294 = vmatpush.msra.mxu0 0.0
        %1295 = vmatpush.msra.mxu0 0.0
        %1296 = vmatpush.msra.mxu0 0.0
        %1297 = vmatpush.msra.mxu0 0.0
        %1298 = vmatpush.msra.mxu0 0.0
        %1299 = vmatpush.msra.mxu0 0.0
        %1300 = vmatpush.msra.mxu0 0.0
        %1301 = vmatpush.msra.mxu0 0.0
        %1302 = vmatpush.msra.mxu0 0.0
        %1303 = vmatpush.msra.mxu0 0.0
        %1304 = vmatpush.msra.mxu0 0.0
        %1305 = vmatpush.msra.mxu0 %v1089
        %1306 = vmatpush.msra.mxu0 %v1088
        %1307 = vmatpush.msra.mxu0 %v1087
        %1308 = vmatpush.msra.mxu0 %v1086
        %1309 = vmatmul.f32.gmra.mxu0 %v1291
        %v1310 = vpop.f32.mrf.mxu0
        %v1311 = vadd.f32 0.0, %v1310
        %1312 = vdwg.mxu0
        %v1313 = vadd.f32 %v1287, %v1311
        %v1314 = vxor.u32 %v1313, 2147483648
        %v1315 = vmul.f32 %v1314, 1.442695
        %v1316 = vpow.pop %v1315
        %v1317 = vadd.f32 %v1316, 1.0
        %v1318 = vrcp.pop %v1317
        %v1319 = vmul.f32 %v1317, %v1318
        %v1320 = vsub.f32 1.0, %v1319
        %v1321 = vmul.f32 %v1318, %v1320
        %v1322 = vadd.f32 %v1318, %v1321
        %vm1323 = vweird.f32 %v1317
        %vm1324 = vweird.f32 %v1318
        %vm1325 = vmor %vm1323, %vm1324
        %v1326 = vsel %vm1325, %v1318, %v1322
        %v1327 = vand.u32 2147483647, %v1317
        %vm1328 = vcmp.eq.f32.partialorder %v1327, 8.507059e+37
        %v1329 = vand.u32 %v1317, 2147483648
        %v1330 = vor.u32 1.1754944e-38, %v1329
        %v1331 = vsel %vm1328, %v1330, %v1326
        %v1332 = vmul.f32 1.0, %v1331
        %v1333 = vadd.f32 %v1311, %v1133
        %1335 = vrot.lane.b32.xlu0 %v1333, 64
        %v1336 = vpop.permute.xlu0 %1335
        %v1338 = vmul.f32 %v1332, %v1336
        %1340 = vrot.lane.b32.xlu0 %v1338, 64
        %v1341 = vpop.permute.xlu0 %1340
        %v1343 = vadd.f32 %v1287, %v1341
        %v1344 = vtanh.pop %v1343
        %v1345 = vsub.f32 1.0, %v1332
        %1347 = vrot.lane.b32.xlu0 %v1344, 96
        %v1348 = vpop.permute.xlu0 %1347
        %v1350 = vmul.f32 %v1345, %v1348
        %v1351 = vmul.f32 %v1332, %v1286
        %v1352 = vadd.f32 %v1350, %v1351
        %v1353 = vld [vmem:[#allocation9] sm:$0xff]
        %v1354 = vld [vmem:[#allocation9 + $0x8] sm:$0xff]
        %v1355 = vld [vmem:[#allocation9 + $0x10] sm:$0xff]
        %v1356 = vld [vmem:[#allocation9 + $0x18] sm:$0xff]
        %v1357 = vld [vmem:[%s14] sm:$0x1]
        %1359 = vrot.lane.b32.xlu0 %v1352, 96
        %v1360 = vpop.permute.xlu0 %1359
        %v1361 = vsel %vm760, %v1360, 0
        %1363 = vmatpush.msra.mxu0 0.0
        %1364 = vmatpush.msra.mxu0 0.0
        %1365 = vmatpush.msra.mxu0 0.0
        %1366 = vmatpush.msra.mxu0 0.0
        %1367 = vmatpush.msra.mxu0 0.0
        %1368 = vmatpush.msra.mxu0 0.0
        %1369 = vmatpush.msra.mxu0 0.0
        %1370 = vmatpush.msra.mxu0 0.0
        %1371 = vmatpush.msra.mxu0 0.0
        %1372 = vmatpush.msra.mxu0 0.0
        %1373 = vmatpush.msra.mxu0 0.0
        %1374 = vmatpush.msra.mxu0 0.0
        %1375 = vmatpush.msra.mxu0 %v1356
        %1376 = vmatpush.msra.mxu0 %v1355
        %1377 = vmatpush.msra.mxu0 %v1354
        %1378 = vmatpush.msra.mxu0 %v1353
        %1379 = vmatmul.f32.gmra.mxu0 %v1361
        %v1380 = vpop.f32.mrf.mxu0
        %v1381 = vadd.f32 %v1357, %v1380
        %1382 = vdwg.mxu0
        %1383 = vst [vmem:[%s520] sm:$0x1] %v1381
        %s1384 = sand.u32 %s359, 1
        %s1385 = scalar_lea.sflag [#allocation8], %s1384
        %s1386 = sand.u32 %s359, 1
        %s1387 = scalar_lea.vmem [#allocation11], %s1386
        // Predicated region
        $region89: #{tpu_custom_call.1} parent=79 // pred_check
          %p1388 = pneg %p369
        $region90: #{tpu_custom_call.1} parent=79 // pred_check_branch
          %1390 = sbr.rel (%p1388) target = $region92
        $region91: #{tpu_custom_call.1} parent=79 // pred_region
          %1392 = vsyncadd %s1385, 0
          %s1393 = scalar_lea.hbm %s15, %s31
          %s1395 = sshll.u32 %s1387, 4
          %s1396 = int_to_ptr.vmem [resolvable:$true] %s1395
          %s1397 = sshll.u32 %s1393, 4
          %s1398 = int_to_ptr.hbm [resolvable:$true] %s1397
          %1400 = dma.vmem_to_hbm [thread:$0]  %s1396, 16, %s1398, %s1385
        $region92: #{tpu_custom_call.1} parent=79 // pred_fallthru
          _
      $region80: #{tpu_custom_call.1} parent=5 // pred_fallthru
        _
      %p1401 = scmp.le.s32.totalorder 2, %s26
      // Predicated region
      $region93: #{tpu_custom_call.1} parent=5 // pred_check
        %p1402 = pneg %p1401
      $region94: #{tpu_custom_call.1} parent=5 // pred_check_branch
        %1404 = sbr.rel (%p1402) target = $region96
      $region95: #{tpu_custom_call.1} parent=5 // pred_region
        %s1405 = ssub.s32 %s26, 2
        // Predicated region
        $region97: #{tpu_custom_call.1} parent=95 // pred_check
          %p1406 = pneg %p375
        $region98: #{tpu_custom_call.1} parent=95 // pred_check_branch
          %1408 = sbr.rel (%p1406) target = $region100
        $region99: #{tpu_custom_call.1} parent=95 // pred_region
          %s1409 = sand.u32 %s360, 1
          %s1410 = scalar_lea.sflag [#allocation8], %s1409
          %s1411 = sand.u32 %s360, 1
          %s1412 = scalar_lea.vmem [#allocation11], %s1411
          %1414 = dma.done %s1410, 16
        $region100: #{tpu_custom_call.1} parent=95 // pred_fallthru
          _
      $region96: #{tpu_custom_call.1} parent=5 // pred_fallthru
        _
    $region6: #{tpu_custom_call.1} parent=1 // loop_footer
      %s30 = sadd.s32 1, %s26
    $region7: #{tpu_custom_call.1} parent=1 // loop_footer_branch
      %25 = sbr.rel target = $region3
    $region8: #{tpu_custom_call.1} parent=1 // loop_exit
      _
    %1415 = vsyncpa [#allocation7], 1
    %s1416 = scalar_lea.sflag [#allocation7], 1
    %1417 = vsyncpa %s1416, 1
    %1418 = vsyncpa [#allocation10], 1
    %1419 = vsyncpa [#allocation8], 1
    %s1420 = scalar_lea.sflag [#allocation8], 1
    %1421 = vsyncpa %s1420, 1

</llo_original>
